<compile_context>
chip_gen: v6e
topology: v6e:2x2x1
jax: 0.10.0
libtpu: 0.0.40
codegen_flags: <defaults>
</compile_context>

<pallas_src>
import functools
import math

import jax
import jax.numpy as jnp
from jax.experimental import pallas as pl
from jax.experimental.pallas import tpu as pltpu

LANE = 128


# ------------------------------ small helpers ------------------------------

def _round_up(x, m):
    return ((x + m - 1) // m) * m


def _pad_rows(a, rows):
    return jnp.pad(a, ((0, rows - a.shape[0]), (0, 0)))


def _pick_tile(dim_padded, max_tile=512):
    """Largest multiple of 128 that divides dim_padded and is <= max_tile."""
    t = min(dim_padded, max_tile)
    while dim_padded % t:
        t -= LANE
    return t


def _vmem_limit_bytes():
    """Explicit scoped-VMEM budget: ~75% of physical, capped at 100 MiB."""
    cap = 64 * 1024 * 1024  # conservative fallback (v7x physical per TC)
    try:
        cap = int(pltpu.get_tpu_info().vmem_capacity_bytes)
    except Exception:
        pass
    return int(min(cap * 3 // 4, 100 * 1024 * 1024))


# ----------------------------- Pallas kernels -------------------------------

def gram_tile_kernel(xa_ref, xb_ref, w1_ref, b1_ref, w2_ref, b2_ref, out_ref,
                     *, gamma, log_sf2, sigma_n2, add_jitter,
                     n_valid_rows, n_valid_cols, tile_r, tile_c):
    """One (tile_r, tile_c) tile of K(enc(xa), enc(xb)).

    The encoder is tiny (L=8 contraction) so it is recomputed per tile; the
    latents never touch HBM.  sigma_f^2 is folded into the exponent.  Diagonal
    jitter is applied only on diagonal tiles (pl.when(i==j)); padded rows/cols
    are fixed up only on edge tiles (identity block for K_tt, zeros for K_ts).
    """
    w1 = w1_ref[...]
    b1 = b1_ref[...]
    w2 = w2_ref[...]
    b2 = b2_ref[...]

    def enc(x):
        h = jnp.dot(x, w1, preferred_element_type=jnp.float32) + b1
        h = jnp.maximum(h, 0.0)
        return jnp.dot(h, w2, preferred_element_type=jnp.float32) + b2

    za = enc(xa_ref[...])                                    # (tile_r, L)
    zb = enc(xb_ref[...])                                    # (tile_c, L)

    # ||za_i||^2 as a column; ||zb_j||^2 as a row via a ones(1,L) matmul so no
    # XLU transpose is emitted; cross term via dot_general contracting dim 1
    # of both operands (no zb.T).
    za2 = jnp.sum(za * za, axis=1, keepdims=True)            # (tile_r, 1)
    ones_l = jnp.ones((1, zb.shape[1]), jnp.float32)
    zb2_row = jax.lax.dot_general(ones_l, zb * zb,
                                  (((1,), (1,)), ((), ())),
                                  preferred_element_type=jnp.float32)  # (1, tile_c)
    cross = jax.lax.dot_general(za, zb, (((1,), (1,)), ((), ())),
                                preferred_element_type=jnp.float32)    # (tile_r, tile_c)

    d2 = jnp.maximum(za2 + zb2_row - 2.0 * cross, 0.0)
    out_ref[...] = jnp.exp(gamma * d2 + log_sf2)

    i = pl.program_id(0)
    j = pl.program_id(1)

    if add_jitter:
        # Only diagonal tiles pay the iota/where (tiles are square for K_tt).
        @pl.when(i == j)
        def _():
            r = jax.lax.broadcasted_iota(jnp.int32, (tile_r, tile_c), 0)
            c = jax.lax.broadcasted_iota(jnp.int32, (tile_r, tile_c), 1)
            out_ref[...] += jnp.where(r == c, sigma_n2, 0.0).astype(jnp.float32)

    # Only edge tiles touching padded rows/cols pay the masking fix-up.
    needs_mask = jnp.logical_or((i + 1) * tile_r > n_valid_rows,
                                (j + 1) * tile_c > n_valid_cols)

    @pl.when(needs_mask)
    def _():
        r = i * tile_r + jax.lax.broadcasted_iota(jnp.int32, (tile_r, tile_c), 0)
        c = j * tile_c + jax.lax.broadcasted_iota(jnp.int32, (tile_r, tile_c), 1)
        valid = jnp.logical_and(r < n_valid_rows, c < n_valid_cols)
        if add_jitter:
            # Identity block in the padded region keeps K_noisy positive
            # definite and exactly decouples padded rows from the real solve.
            pad_fill = jnp.where(r == c, 1.0, 0.0).astype(jnp.float32)
        else:
            pad_fill = jnp.zeros((tile_r, tile_c), jnp.float32)
        out_ref[...] = jnp.where(valid, out_ref[...], pad_fill)


def predict_kernel(kts_ref, alpha_ref, v_ref, out_ref, *, sf2_plus_sn2):
    """Fused GP posterior reductions over one lane-dense M tile.

      mean[m] = sum_n K_ts[n,m] * alpha[n]
      var[m]  = sigma_f^2 + sigma_n^2 - sum_n K_ts[n,m] * V[n,m]
      out     = [[mean...], [var...]]   shape (2, TILE_M), single store.
    """
    kts = kts_ref[...]                                       # (Np, TILE_M)
    alpha = alpha_ref[...]                                   # (Np, 1) -> bcast
    v = v_ref[...]                                           # (Np, TILE_M)

    mean = jnp.sum(kts * alpha, axis=0, keepdims=True)       # (1, TILE_M)
    quad = jnp.sum(kts * v, axis=0, keepdims=True)           # (1, TILE_M)
    out_ref[...] = jnp.concatenate([mean, sf2_plus_sn2 - quad], axis=0)


# ------------------------------ pallas_call glue ----------------------------

def pallas_gram(xa, xb, w1, b1, w2, b2, *, gamma, log_sf2, sigma_n2,
                add_jitter, n_valid_rows, n_valid_cols, vmem_limit,
                max_tile=512):
    """K(enc(xa), enc(xb)) of shape (rows(xa), rows(xb)), tiled 2-D grid."""
    ra, d = xa.shape
    rb = xb.shape[0]
    tr = _pick_tile(ra, max_tile)
    tc = _pick_tile(rb, max_tile)
    if add_jitter:
        # Square tiles so pl.when(i == j) exactly covers the diagonal.
        tr = tc = min(tr, tc)
    grid = (ra // tr, rb // tc)

    kern = functools.partial(
        gram_tile_kernel, gamma=gamma, log_sf2=log_sf2, sigma_n2=sigma_n2,
        add_jitter=add_jitter, n_valid_rows=n_valid_rows,
        n_valid_cols=n_valid_cols, tile_r=tr, tile_c=tc)

    return pl.pallas_call(
        kern,
        out_shape=jax.ShapeDtypeStruct((ra, rb), jnp.float32),
        grid=grid,
        in_specs=[pl.BlockSpec((tr, d), lambda i, j: (i, 0)),
                  pl.BlockSpec((tc, d), lambda i, j: (j, 0)),
                  pl.BlockSpec(w1.shape, lambda i, j: (0, 0)),
                  pl.BlockSpec(b1.shape, lambda i, j: (0, 0)),
                  pl.BlockSpec(w2.shape, lambda i, j: (0, 0)),
                  pl.BlockSpec(b2.shape, lambda i, j: (0, 0))],
        out_specs=pl.BlockSpec((tr, tc), lambda i, j: (i, j)),
        compiler_params=pltpu.CompilerParams(
            dimension_semantics=("parallel", "parallel"),
            vmem_limit_bytes=vmem_limit),
    )(xa, xb, w1, b1, w2, b2)


def pallas_predict(kts, alpha, v, *, sigma_f2, sigma_n2, vmem_limit,
                   max_tile=512):
    n, m = kts.shape
    tm = _pick_tile(m, max_tile)
    kern = functools.partial(predict_kernel, sf2_plus_sn2=sigma_f2 + sigma_n2)
    # TODO(synk): for very large N, reduce N in chunks with a VMEM accumulator
    # instead of keeping the full (N, TILE_M) columns resident.
    return pl.pallas_call(
        kern,
        out_shape=jax.ShapeDtypeStruct((2, m), jnp.float32),
        grid=(m // tm,),
        in_specs=[pl.BlockSpec((n, tm), lambda j: (0, j)),
                  pl.BlockSpec((n, 1), lambda j: (0, 0)),
                  pl.BlockSpec((n, tm), lambda j: (0, j))],
        out_specs=pl.BlockSpec((2, tm), lambda j: (0, j)),
        compiler_params=pltpu.CompilerParams(
            dimension_semantics=("parallel",),
            vmem_limit_bytes=vmem_limit),
    )(kts, alpha, v)


# --------------------------------- model ------------------------------------

class JointModelPallas:
    """JointModel.forward: z = ae.encode(x); (mean, var) = gp.predict(...)."""

    def __init__(self, key, in_dim=16, hidden=32, latent=8,
                 lengthscale=1.0, sigma_f2=1.0, sigma_n2=1e-2):
        k1, k2, k3, k4 = jax.random.split(key, 4)
        s1 = 1.0 / jnp.sqrt(in_dim)
        s2 = 1.0 / jnp.sqrt(hidden)
        self.w1 = (jax.random.normal(k1, (in_dim, hidden)) * s1).astype(jnp.float32)
        self.b1 = (jax.random.normal(k2, (1, hidden)) * 0.01).astype(jnp.float32)
        self.w2 = (jax.random.normal(k3, (hidden, latent)) * s2).astype(jnp.float32)
        self.b2 = (jax.random.normal(k4, (1, latent)) * 0.01).astype(jnp.float32)
        self.lengthscale = float(lengthscale)
        self.sigma_f2 = float(sigma_f2)
        self.sigma_n2 = float(sigma_n2)

    # --- JointModel.forward (ae.encode fused into Gram tiles, then predict) --
    def forward(self, x_train, y_train, x_test):
        n = x_train.shape[0]
        m = x_test.shape[0]
        np_ = _round_up(n, LANE)
        mp_ = _round_up(m, LANE)

        # Lane-dense padding; padded regions are masked inside the kernels so
        # all stores are unmasked 128-wide vst and the Cholesky stays PD.
        xtr = _pad_rows(x_train, np_)
        xte = _pad_rows(x_test, mp_)
        ytr = _pad_rows(y_train, np_)

        gamma = -0.5 / (self.lengthscale * self.lengthscale)
        log_sf2 = math.log(self.sigma_f2)
        vmem_limit = _vmem_limit_bytes()

        # K(Z_train, Z_train) + sigma_n^2 I   (padded block is identity)
        k_noisy = pallas_gram(
            xtr, xtr, self.w1, self.b1, self.w2, self.b2,
            gamma=gamma, log_sf2=log_sf2, sigma_n2=self.sigma_n2,
            add_jitter=True, n_valid_rows=n, n_valid_cols=n,
            vmem_limit=vmem_limit)

        # K(Z_train, Z_test) stored as (Np, Mp) so the solve and predict
        # kernel consume it with no transpose relayouts (padded rows = 0).
        k_ts = pallas_gram(
            xtr, xte, self.w1, self.b1, self.w2, self.b2,
            gamma=gamma, log_sf2=log_sf2, sigma_n2=self.sigma_n2,
            add_jitter=False, n_valid_rows=n, n_valid_cols=m,
            vmem_limit=vmem_limit)

        # TODO(synk): dense Cholesky factorization / triangular solve has no
        # clean Pallas TPU primitive; it stays in jax.scipy.  Both solves are
        # batched into one launch so the factor streams from HBM once.
        chol = jax.scipy.linalg.cho_factor(k_noisy, lower=True)
        sol = jax.scipy.linalg.cho_solve(chol, jnp.concatenate([ytr, k_ts], axis=1))
        alpha = sol[:, :1]                                    # (Np, 1)
        v = sol[:, 1:]                                        # (Np, Mp)

        out = pallas_predict(k_ts, alpha, v, sigma_f2=self.sigma_f2,
                             sigma_n2=self.sigma_n2, vmem_limit=vmem_limit)
        mean = out[0, :m][:, None]                            # (M, 1)
        var = out[1, :m][:, None]                             # (M, 1)
        return mean, var

    # pure-JAX reference of the same math (for a sanity check)
    def forward_ref(self, x_train, y_train, x_test):
        def enc(x):
            h = jnp.maximum(x @ self.w1 + self.b1, 0.0)
            return h @ self.w2 + self.b2

        def rbf(a, b):
            d2 = (jnp.sum(a * a, 1)[:, None] + jnp.sum(b * b, 1)[None, :]
                  - 2.0 * a @ b.T)
            return self.sigma_f2 * jnp.exp(-0.5 * jnp.maximum(d2, 0.0)
                                           / self.lengthscale ** 2)

        zt, zs = enc(x_train), enc(x_test)
        k_tt = rbf(zt, zt) + self.sigma_n2 * jnp.eye(zt.shape[0])
        k_st = rbf(zs, zt)
        chol = jax.scipy.linalg.cho_factor(k_tt, lower=True)
        alpha = jax.scipy.linalg.cho_solve(chol, y_train)
        v = jax.scipy.linalg.cho_solve(chol, k_st.T)
        mean = k_st @ alpha
        var = (self.sigma_f2 + self.sigma_n2
               - jnp.sum(k_st * v.T, axis=1, keepdims=True))
        return mean, var


# ----------------------------------- main ------------------------------------

if __name__ == "__main__":
    key = jax.random.PRNGKey(0)
    kx, ky, kt, kp = jax.random.split(key, 4)

    N, M, D = 12, 10, 16          # deliberately non-aligned / asymmetric
    x_train = jax.random.normal(kx, (N, D), dtype=jnp.float32)
    y_train = jax.random.normal(ky, (N, 1), dtype=jnp.float32)
    x_test = jax.random.normal(kt, (M, D), dtype=jnp.float32)

    model = JointModelPallas(kp, in_dim=D, hidden=32, latent=8)

    y_pred, y_var = model.forward(x_train, y_train, x_test)
    jax.block_until_ready((y_pred, y_var))

    # sanity check against the pure-JAX reference
    ref_pred, ref_var = model.forward_ref(x_train, y_train, x_test)
    assert y_pred.shape == (M, 1) and y_var.shape == (M, 1)
    assert jnp.allclose(y_pred, ref_pred, atol=1e-4, rtol=1e-4)
    assert jnp.allclose(y_var, ref_var, atol=1e-4, rtol=1e-4)

    print("KERNEL_OK")
</pallas_src>

<mosaic_0001>
module attributes {stable_mosaic.version = 11 : i64} {
  func.func @gram_tile_kernel(%arg0: i32, %arg1: i32, %arg2: memref<128x16xf32, #tpu.memory_space<vmem>>, %arg3: memref<128x16xf32, #tpu.memory_space<vmem>>, %arg4: memref<16x32xf32, #tpu.memory_space<vmem>>, %arg5: memref<1x32xf32, #tpu.memory_space<vmem>>, %arg6: memref<32x8xf32, #tpu.memory_space<vmem>>, %arg7: memref<1x8xf32, #tpu.memory_space<vmem>>, %arg8: memref<128x128xf32, #tpu.memory_space<vmem>>) attributes {dimension_semantics = [#tpu.dimension_semantics<parallel>, #tpu.dimension_semantics<parallel>], iteration_bounds = array<i64: 1, 1>, scalar_prefetch = 0 : i64, scratch_operands = 0 : i64, tpu.core_type = #tpu.core_type<tc>, window_params = [{transform_indices = @transform_0, window_bounds = array<i64: 128, 16>}, {transform_indices = @transform_1, window_bounds = array<i64: 128, 16>}, {pipeline_mode = #tpu.pipeline_mode<synchronous>, transform_indices = @transform_2, window_bounds = array<i64: 16, 32>}, {pipeline_mode = #tpu.pipeline_mode<synchronous>, transform_indices = @transform_3, window_bounds = array<i64: 1, 32>}, {pipeline_mode = #tpu.pipeline_mode<synchronous>, transform_indices = @transform_4, window_bounds = array<i64: 32, 8>}, {pipeline_mode = #tpu.pipeline_mode<synchronous>, transform_indices = @transform_5, window_bounds = array<i64: 1, 8>}, {transform_indices = @transform_6, window_bounds = array<i64: 128, 128>}]} {
    %c0 = arith.constant 0 : index
    %c0_0 = arith.constant 0 : index
    %0 = vector.load %arg4[%c0, %c0_0] : memref<16x32xf32, #tpu.memory_space<vmem>>, vector<16x32xf32>
    %c0_1 = arith.constant 0 : index
    %c0_2 = arith.constant 0 : index
    %1 = vector.load %arg5[%c0_1, %c0_2] : memref<1x32xf32, #tpu.memory_space<vmem>>, vector<1x32xf32>
    %c0_3 = arith.constant 0 : index
    %c0_4 = arith.constant 0 : index
    %2 = vector.load %arg6[%c0_3, %c0_4] : memref<32x8xf32, #tpu.memory_space<vmem>>, vector<32x8xf32>
    %c0_5 = arith.constant 0 : index
    %c0_6 = arith.constant 0 : index
    %3 = vector.load %arg7[%c0_5, %c0_6] : memref<1x8xf32, #tpu.memory_space<vmem>>, vector<1x8xf32>
    %c0_7 = arith.constant 0 : index
    %c0_8 = arith.constant 0 : index
    %4 = vector.load %arg2[%c0_7, %c0_8] : memref<128x16xf32, #tpu.memory_space<vmem>>, vector<128x16xf32>
    %cst = arith.constant dense<0.000000e+00> : vector<128x32xf32>
    %5 = tpu.matmul %4, %0, %cst {dimension_numbers = #tpu.dot_dimension_numbers<[1], [0], [0], [1], [0, 0, 1, 1], [], []>} : vector<128x16xf32>, vector<16x32xf32>, vector<128x32xf32> -> vector<128x32xf32>
    %6 = vector.broadcast %1 : vector<1x32xf32> to vector<128x32xf32>
    %7 = arith.addf %5, %6 : vector<128x32xf32>
    %cst_9 = arith.constant 0.000000e+00 : f32
    %8 = vector.broadcast %cst_9 : f32 to vector<128x32xf32>
    %9 = arith.maximumf %7, %8 : vector<128x32xf32>
    %cst_10 = arith.constant dense<0.000000e+00> : vector<128x8xf32>
    %10 = tpu.matmul %9, %2, %cst_10 {dimension_numbers = #tpu.dot_dimension_numbers<[1], [0], [0], [1], [0, 0, 1, 1], [], []>} : vector<128x32xf32>, vector<32x8xf32>, vector<128x8xf32> -> vector<128x8xf32>
    %11 = vector.broadcast %3 : vector<1x8xf32> to vector<128x8xf32>
    %12 = arith.addf %10, %11 : vector<128x8xf32>
    %c0_11 = arith.constant 0 : index
    %c0_12 = arith.constant 0 : index
    %13 = vector.load %arg3[%c0_11, %c0_12] : memref<128x16xf32, #tpu.memory_space<vmem>>, vector<128x16xf32>
    %cst_13 = arith.constant dense<0.000000e+00> : vector<128x32xf32>
    %14 = tpu.matmul %13, %0, %cst_13 {dimension_numbers = #tpu.dot_dimension_numbers<[1], [0], [0], [1], [0, 0, 1, 1], [], []>} : vector<128x16xf32>, vector<16x32xf32>, vector<128x32xf32> -> vector<128x32xf32>
    %15 = vector.broadcast %1 : vector<1x32xf32> to vector<128x32xf32>
    %16 = arith.addf %14, %15 : vector<128x32xf32>
    %cst_14 = arith.constant 0.000000e+00 : f32
    %17 = vector.broadcast %cst_14 : f32 to vector<128x32xf32>
    %18 = arith.maximumf %16, %17 : vector<128x32xf32>
    %cst_15 = arith.constant dense<0.000000e+00> : vector<128x8xf32>
    %19 = tpu.matmul %18, %2, %cst_15 {dimension_numbers = #tpu.dot_dimension_numbers<[1], [0], [0], [1], [0, 0, 1, 1], [], []>} : vector<128x32xf32>, vector<32x8xf32>, vector<128x8xf32> -> vector<128x8xf32>
    %20 = vector.broadcast %3 : vector<1x8xf32> to vector<128x8xf32>
    %21 = arith.addf %19, %20 : vector<128x8xf32>
    %22 = arith.mulf %12, %12 : vector<128x8xf32>
    %cst_16 = arith.constant dense<0.000000e+00> : vector<128xf32>
    %23 = vector.multi_reduction <add>, %22, %cst_16 [1] : vector<128x8xf32> to vector<128xf32>
    %24 = vector.shape_cast %23 : vector<128xf32> to vector<128x1xf32>
    %cst_17 = arith.constant 1.000000e+00 : f32
    %25 = vector.broadcast %cst_17 : f32 to vector<1x8xf32>
    %26 = arith.mulf %21, %21 : vector<128x8xf32>
    %cst_18 = arith.constant dense<0.000000e+00> : vector<1x128xf32>
    %27 = tpu.matmul %25, %26, %cst_18 {dimension_numbers = #tpu.dot_dimension_numbers<[1], [1], [0], [0], [0, 0, 1, 0], [], []>} : vector<1x8xf32>, vector<128x8xf32>, vector<1x128xf32> -> vector<1x128xf32>
    %cst_19 = arith.constant dense<0.000000e+00> : vector<128x128xf32>
    %28 = tpu.matmul %12, %21, %cst_19 {dimension_numbers = #tpu.dot_dimension_numbers<[1], [1], [0], [0], [0, 0, 1, 0], [], []>} : vector<128x8xf32>, vector<128x8xf32>, vector<128x128xf32> -> vector<128x128xf32>
    %29 = vector.broadcast %24 : vector<128x1xf32> to vector<128x128xf32>
    %30 = vector.broadcast %27 : vector<1x128xf32> to vector<128x128xf32>
    %31 = arith.addf %29, %30 : vector<128x128xf32>
    %cst_20 = arith.constant 2.000000e+00 : f32
    %32 = vector.broadcast %cst_20 : f32 to vector<128x128xf32>
    %33 = arith.mulf %32, %28 : vector<128x128xf32>
    %34 = arith.subf %31, %33 : vector<128x128xf32>
    %cst_21 = arith.constant 0.000000e+00 : f32
    %35 = vector.broadcast %cst_21 : f32 to vector<128x128xf32>
    %36 = arith.maximumf %34, %35 : vector<128x128xf32>
    %cst_22 = arith.constant -5.000000e-01 : f32
    %37 = vector.broadcast %cst_22 : f32 to vector<128x128xf32>
    %38 = arith.mulf %37, %36 : vector<128x128xf32>
    %cst_23 = arith.constant 0.000000e+00 : f32
    %39 = vector.broadcast %cst_23 : f32 to vector<128x128xf32>
    %40 = arith.addf %38, %39 : vector<128x128xf32>
    %41 = math.exp %40 : vector<128x128xf32>
    %c0_24 = arith.constant 0 : index
    %c0_25 = arith.constant 0 : index
    %42 = vector.load %arg8[%c0_24, %c0_25] : memref<128x128xf32, #tpu.memory_space<vmem>>, vector<128x128xf32>
    tpu.vector_store %arg8[%c0_24, %c0_25], %41 {strides = array<i32>} : memref<128x128xf32, #tpu.memory_space<vmem>>, vector<128x128xf32>,
    %43 = arith.cmpi eq, %arg0, %arg1 : i32
    %44 = arith.extui %43 : i1 to i32
    %c0_i32 = arith.constant 0 : i32
    %45 = arith.cmpi ne, %44, %c0_i32 : i32
    scf.if %45 {
      %55 = tpu.iota {dimensions = array<i32: 0>} : vector<128x128xi32>
      %56 = tpu.iota {dimensions = array<i32: 1>} : vector<128x128xi32>
      %c0_30 = arith.constant 0 : index
      %c0_31 = arith.constant 0 : index
      %57 = vector.load %arg8[%c0_30, %c0_31] : memref<128x128xf32, #tpu.memory_space<vmem>>, vector<128x128xf32>
      %58 = arith.cmpi eq, %55, %56 : vector<128x128xi32>
      %cst_32 = arith.constant 0.00999999977 : f32
      %cst_33 = arith.constant 0.000000e+00 : f32
      %59 = vector.broadcast %cst_32 : f32 to vector<128x128xf32>
      %60 = vector.broadcast %cst_33 : f32 to vector<128x128xf32>
      %61 = arith.select %58, %59, %60 : vector<128x128xi1>, vector<128x128xf32>
      %62 = arith.addf %57, %61 : vector<128x128xf32>
      %c0_34 = arith.constant 0 : index
      %c0_35 = arith.constant 0 : index
      %63 = vector.load %arg8[%c0_34, %c0_35] : memref<128x128xf32, #tpu.memory_space<vmem>>, vector<128x128xf32>
      tpu.vector_store %arg8[%c0_34, %c0_35], %62 {strides = array<i32>} : memref<128x128xf32, #tpu.memory_space<vmem>>, vector<128x128xf32>,
    } else {
    }
    %c1_i32 = arith.constant 1 : i32
    %46 = arith.addi %arg0, %c1_i32 : i32
    %c128_i32 = arith.constant 128 : i32
    %47 = arith.muli %46, %c128_i32 : i32
    %c12_i32 = arith.constant 12 : i32
    %48 = arith.cmpi sgt, %47, %c12_i32 : i32
    %c1_i32_26 = arith.constant 1 : i32
    %49 = arith.addi %arg1, %c1_i32_26 : i32
    %c128_i32_27 = arith.constant 128 : i32
    %50 = arith.muli %49, %c128_i32_27 : i32
    %c12_i32_28 = arith.constant 12 : i32
    %51 = arith.cmpi sgt, %50, %c12_i32_28 : i32
    %52 = arith.ori %48, %51 : i1
    %53 = arith.extui %52 : i1 to i32
    %c0_i32_29 = arith.constant 0 : i32
    %54 = arith.cmpi ne, %53, %c0_i32_29 : i32
    scf.if %54 {
      %c128_i32_30 = arith.constant 128 : i32
      %55 = arith.muli %arg0, %c128_i32_30 : i32
      %56 = tpu.iota {dimensions = array<i32: 0>} : vector<128x128xi32>
      %57 = vector.broadcast %55 : i32 to vector<128x128xi32>
      %58 = arith.addi %57, %56 : vector<128x128xi32>
      %c128_i32_31 = arith.constant 128 : i32
      %59 = arith.muli %arg1, %c128_i32_31 : i32
      %60 = tpu.iota {dimensions = array<i32: 1>} : vector<128x128xi32>
      %61 = vector.broadcast %59 : i32 to vector<128x128xi32>
      %62 = arith.addi %61, %60 : vector<128x128xi32>
      %c12_i32_32 = arith.constant 12 : i32
      %63 = vector.broadcast %c12_i32_32 : i32 to vector<128x128xi32>
      %64 = arith.cmpi slt, %58, %63 : vector<128x128xi32>
      %c12_i32_33 = arith.constant 12 : i32
      %65 = vector.broadcast %c12_i32_33 : i32 to vector<128x128xi32>
      %66 = arith.cmpi slt, %62, %65 : vector<128x128xi32>
      %67 = arith.andi %64, %66 : vector<128x128xi1>
      %68 = arith.cmpi eq, %58, %62 : vector<128x128xi32>
      %cst_34 = arith.constant 1.000000e+00 : f32
      %cst_35 = arith.constant 0.000000e+00 : f32
      %69 = vector.broadcast %cst_34 : f32 to vector<128x128xf32>
      %70 = vector.broadcast %cst_35 : f32 to vector<128x128xf32>
      %71 = arith.select %68, %69, %70 : vector<128x128xi1>, vector<128x128xf32>
      %c0_36 = arith.constant 0 : index
      %c0_37 = arith.constant 0 : index
      %72 = vector.load %arg8[%c0_36, %c0_37] : memref<128x128xf32, #tpu.memory_space<vmem>>, vector<128x128xf32>
      %73 = arith.select %67, %72, %71 : vector<128x128xi1>, vector<128x128xf32>
      %c0_38 = arith.constant 0 : index
      %c0_39 = arith.constant 0 : index
      %74 = vector.load %arg8[%c0_38, %c0_39] : memref<128x128xf32, #tpu.memory_space<vmem>>, vector<128x128xf32>
      tpu.vector_store %arg8[%c0_38, %c0_39], %73 {strides = array<i32>} : memref<128x128xf32, #tpu.memory_space<vmem>>, vector<128x128xf32>,
    } else {
    }
    return
  }
  func.func @transform_0(%arg0: i32, %arg1: i32) -> (i32, i32) {
    %c0_i32 = arith.constant 0 : i32
    %c0_i32_0 = arith.constant 0 : i32
    return %arg0, %c0_i32 : i32, i32
  }
  func.func @transform_1(%arg0: i32, %arg1: i32) -> (i32, i32) {
    %c0_i32 = arith.constant 0 : i32
    %c0_i32_0 = arith.constant 0 : i32
    return %arg1, %c0_i32 : i32, i32
  }
  func.func @transform_2(%arg0: i32, %arg1: i32) -> (i32, i32) {
    %c0_i32 = arith.constant 0 : i32
    %c0_i32_0 = arith.constant 0 : i32
    %c0_i32_1 = arith.constant 0 : i32
    return %c0_i32, %c0_i32_0 : i32, i32
  }
  func.func @transform_3(%arg0: i32, %arg1: i32) -> (i32, i32) {
    %c0_i32 = arith.constant 0 : i32
    %c0_i32_0 = arith.constant 0 : i32
    %c0_i32_1 = arith.constant 0 : i32
    return %c0_i32, %c0_i32_0 : i32, i32
  }
  func.func @transform_4(%arg0: i32, %arg1: i32) -> (i32, i32) {
    %c0_i32 = arith.constant 0 : i32
    %c0_i32_0 = arith.constant 0 : i32
    %c0_i32_1 = arith.constant 0 : i32
    return %c0_i32, %c0_i32_0 : i32, i32
  }
  func.func @transform_5(%arg0: i32, %arg1: i32) -> (i32, i32) {
    %c0_i32 = arith.constant 0 : i32
    %c0_i32_0 = arith.constant 0 : i32
    %c0_i32_1 = arith.constant 0 : i32
    return %c0_i32, %c0_i32_0 : i32, i32
  }
  func.func @transform_6(%arg0: i32, %arg1: i32) -> (i32, i32) {
    %c0_i32 = arith.constant 0 : i32
    return %arg0, %arg1 : i32, i32
  }
}

</mosaic_0001>

<llo_original>
// kernel: tpu_custom_call.1
$region0: #{tpu_custom_call.1}
  #allocation0 [shape = 'u32[]', space=smem, size = 0x4, offset = 0x4, fixed_abs, tag = 'smem constant byte address 0x4 - core index']
  #allocation1 [shape = 'u32[144,128]{1,0:T(1,128)}', space=vmem, size = 0x12000, scoped, tag = 'internal scratch']
  %s0 = inlined_call_operand.vmem [shape: f32[128,16], index: 0, kind: input, shape index: {}]
  %s1 = inlined_call_operand.vmem [shape: f32[128,16], index: 1, kind: input, shape index: {}]
  %s2 = inlined_call_operand.vmem [shape: f32[16,32], index: 2, kind: input, shape index: {}]
  %s3 = inlined_call_operand.vmem [shape: f32[1,32], index: 3, kind: input, shape index: {}]
  %s4 = inlined_call_operand.vmem [shape: f32[32,8], index: 4, kind: input, shape index: {}]
  %s5 = inlined_call_operand.vmem [shape: f32[1,8], index: 5, kind: input, shape index: {}]
  %s6 = inlined_call_operand.hbm [shape: f32[128,128], index: 6, kind: output, shape index: {}]
  %s7 = sld [smem:[#allocation0]]
  $region42: #{tpu_custom_call.1} parent=0
    _
  %s9 = ssub.s32 1, %s7
  %s10 = scalar_select 0, %s9, %s7
  $region1: #{tpu_custom_call.1} parent=0
    #allocation2 [shape = 'u8[65536]{0}', space=vmem, size = 0x10000, scoped, tag = 'output window, operand 0, single buffered']
    #allocation3 [shape = 's32[1]{0}', space=sflag, size = 0x4, scoped, tag = 'scoped memory for tpu_custom_call.1']
    %11 = vsyncpa [#allocation3], 0
    // Predicated region
    $region2: #{tpu_custom_call.1} parent=1 // pred_check
      _
    $region3: #{tpu_custom_call.1} parent=1 // pred_check_branch
      %13 = sbr.rel (0) target = $region5
    $region4: #{tpu_custom_call.1} parent=1 // pred_region
      _
    $region5: #{tpu_custom_call.1} parent=1 // pred_fallthru
      _
    // Predicated region
    $region6: #{tpu_custom_call.1} parent=1 // pred_check
      _
    $region7: #{tpu_custom_call.1} parent=1 // pred_check_branch
      %15 = sbr.rel (0) target = $region9
    $region8: #{tpu_custom_call.1} parent=1 // pred_region
      _
    $region9: #{tpu_custom_call.1} parent=1 // pred_fallthru
      _
    // Predicated region
    $region10: #{tpu_custom_call.1} parent=1 // pred_check
      _
    $region11: #{tpu_custom_call.1} parent=1 // pred_check_branch
      %17 = sbr.rel (0) target = $region13
    $region12: #{tpu_custom_call.1} parent=1 // pred_region
      _
    $region13: #{tpu_custom_call.1} parent=1 // pred_fallthru
      _
    // Predicated region
    $region14: #{tpu_custom_call.1} parent=1 // pred_check
      _
    $region15: #{tpu_custom_call.1} parent=1 // pred_check_branch
      %19 = sbr.rel (0) target = $region17
    $region16: #{tpu_custom_call.1} parent=1 // pred_region
      _
    $region17: #{tpu_custom_call.1} parent=1 // pred_fallthru
      _
    // Predicated region
    $region18: #{tpu_custom_call.1} parent=1 // pred_check
      _
    $region19: #{tpu_custom_call.1} parent=1 // pred_check_branch
      %21 = sbr.rel (0) target = $region21
    $region20: #{tpu_custom_call.1} parent=1 // pred_region
      _
    $region21: #{tpu_custom_call.1} parent=1 // pred_fallthru
      _
    // Predicated region
    $region22: #{tpu_custom_call.1} parent=1 // pred_check
      _
    $region23: #{tpu_custom_call.1} parent=1 // pred_check_branch
      %23 = sbr.rel (0) target = $region25
    $region24: #{tpu_custom_call.1} parent=1 // pred_region
      _
    $region25: #{tpu_custom_call.1} parent=1 // pred_fallthru
      _
    %v24 = vld [vmem:[%s2] sm:$0xff]
    %v25 = vld [vmem:[%s2 + $0x8] sm:$0xff]
    %v26 = vld [vmem:[%s3] sm:$0x1]
    %v27 = vld [vmem:[%s4] sm:$0xff]
    %v28 = vld [vmem:[%s4 + $0x8] sm:$0xff]
    %v29 = vld [vmem:[%s4 + $0x10] sm:$0xff]
    %v30 = vld [vmem:[%s4 + $0x18] sm:$0xff]
    %v31 = vld [vmem:[%s5] sm:$0x1]
    %v32 = vld [vmem:[%s0] sm:$0xff]
    %v33 = vld [vmem:[%s0 + $0x8] sm:$0xff]
    %v34 = vld [vmem:[%s0 + $0x10] sm:$0xff]
    %v35 = vld [vmem:[%s0 + $0x18] sm:$0xff]
    %v36 = vld [vmem:[%s0 + $0x20] sm:$0xff]
    %v37 = vld [vmem:[%s0 + $0x28] sm:$0xff]
    %v38 = vld [vmem:[%s0 + $0x30] sm:$0xff]
    %v39 = vld [vmem:[%s0 + $0x38] sm:$0xff]
    %v40 = vld [vmem:[%s0 + $0x40] sm:$0xff]
    %v41 = vld [vmem:[%s0 + $0x48] sm:$0xff]
    %v42 = vld [vmem:[%s0 + $0x50] sm:$0xff]
    %v43 = vld [vmem:[%s0 + $0x58] sm:$0xff]
    %v44 = vld [vmem:[%s0 + $0x60] sm:$0xff]
    %v45 = vld [vmem:[%s0 + $0x68] sm:$0xff]
    %v46 = vld [vmem:[%s0 + $0x70] sm:$0xff]
    %v47 = vld [vmem:[%s0 + $0x78] sm:$0xff]
    %v49 = vlaneseq
    %v50 = vshrl.u32 %v49, 7
    %v51 = vsub.s32 0, %v50
    %v52 = vrot.slane %v26, %v51
    %vm54 = vcmask 130048
    %v56 = vsel %vm54, %v32, 0
    %v59 = vsel %vm54, %v33, 0
    %v62 = vsel %vm54, %v34, 0
    %v65 = vsel %vm54, %v35, 0
    %v68 = vsel %vm54, %v36, 0
    %v71 = vsel %vm54, %v37, 0
    %v74 = vsel %vm54, %v38, 0
    %v77 = vsel %vm54, %v39, 0
    %v80 = vsel %vm54, %v40, 0
    %v83 = vsel %vm54, %v41, 0
    %v86 = vsel %vm54, %v42, 0
    %v89 = vsel %vm54, %v43, 0
    %v92 = vsel %vm54, %v44, 0
    %v95 = vsel %vm54, %v45, 0
    %v98 = vsel %vm54, %v46, 0
    %v101 = vsel %vm54, %v47, 0
    %103 = vmatprep.subr.mxu0 0.0
    %104 = vmatpush1.msra.mxu0 0.0
    %105 = vmatprep.subr.mxu0 0.0
    %106 = vmatpush1.msra.mxu0 0.0
    %107 = vmatprep.subr.mxu0 0.0
    %108 = vmatpush1.msra.mxu0 0.0
    %109 = vmatprep.subr.mxu0 0.0
    %110 = vmatpush1.msra.mxu0 0.0
    %111 = vmatprep.subr.mxu0 0.0
    %112 = vmatpush1.msra.mxu0 0.0
    %113 = vmatprep.subr.mxu0 0.0
    %114 = vmatpush1.msra.mxu0 0.0
    %115 = vmatprep.subr.mxu0 0.0
    %116 = vmatpush1.msra.mxu0 0.0
    %117 = vmatprep.subr.mxu0 0.0
    %118 = vmatpush1.msra.mxu0 0.0
    %119 = vmatprep.subr.mxu0 0.0
    %120 = vmatpush1.msra.mxu0 0.0
    %121 = vmatprep.subr.mxu0 0.0
    %122 = vmatpush1.msra.mxu0 0.0
    %123 = vmatprep.subr.mxu0 0.0
    %124 = vmatpush1.msra.mxu0 0.0
    %125 = vmatprep.subr.mxu0 0.0
    %126 = vmatpush1.msra.mxu0 0.0
    %127 = vmatprep.subr.mxu0 0.0
    %128 = vmatpush1.msra.mxu0 0.0
    %129 = vmatprep.subr.mxu0 0.0
    %130 = vmatpush1.msra.mxu0 0.0
    %131 = vmatprep.subr.mxu0 0.0
    %132 = vmatpush1.msra.mxu0 %v25
    %133 = vmatprep.subr.mxu0 0.0
    %134 = vmatpush1.msra.mxu0 %v24
    %135 = vmatprep.subr.mxu0 0.0
    %136 = vmatpush2.msra.mxu0 0.0
    %137 = vmatprep.subr.mxu0 0.0
    %138 = vmatpush2.msra.mxu0 0.0
    %139 = vmatprep.subr.mxu0 0.0
    %140 = vmatpush2.msra.mxu0 0.0
    %141 = vmatprep.subr.mxu0 0.0
    %142 = vmatpush2.msra.mxu0 0.0
    %143 = vmatprep.subr.mxu0 0.0
    %144 = vmatpush2.msra.mxu0 0.0
    %145 = vmatprep.subr.mxu0 0.0
    %146 = vmatpush2.msra.mxu0 0.0
    %147 = vmatprep.subr.mxu0 0.0
    %148 = vmatpush2.msra.mxu0 0.0
    %149 = vmatprep.subr.mxu0 0.0
    %150 = vmatpush2.msra.mxu0 0.0
    %151 = vmatprep.subr.mxu0 0.0
    %152 = vmatpush2.msra.mxu0 0.0
    %153 = vmatprep.subr.mxu0 0.0
    %154 = vmatpush2.msra.mxu0 0.0
    %155 = vmatprep.subr.mxu0 0.0
    %156 = vmatpush2.msra.mxu0 0.0
    %157 = vmatprep.subr.mxu0 0.0
    %158 = vmatpush2.msra.mxu0 0.0
    %159 = vmatprep.subr.mxu0 0.0
    %160 = vmatpush2.msra.mxu0 0.0
    %161 = vmatprep.subr.mxu0 0.0
    %162 = vmatpush2.msra.mxu0 0.0
    %163 = vmatprep.subr.mxu0 0.0
    %164 = vmatpush2.msra.mxu0 0.0
    %165 = vmatprep.subr.mxu0 0.0
    %166 = vmatpush2.msra.mxu0 0.0
    %167 = vmatprep.mubr.f32.mxu0 0.0
    %168 = vmatmul.mubr.f32.gmra.mxu0 %v56
    %v169 = vpop.f32.mrf.mxu0
    %v170 = vadd.f32 %v52, %v169
    %v171 = vpop.f32.mrf.mxu0
    %172 = vmatprep.mubr.f32.mxu0 0.0
    %173 = vmatmul.mubr.f32.gmra.mxu0 %v59
    %v174 = vpop.f32.mrf.mxu0
    %v175 = vadd.f32 %v52, %v174
    %v176 = vpop.f32.mrf.mxu0
    %177 = vmatprep.mubr.f32.mxu0 0.0
    %178 = vmatmul.mubr.f32.gmra.mxu0 %v62
    %v179 = vpop.f32.mrf.mxu0
    %v180 = vadd.f32 %v52, %v179
    %v181 = vpop.f32.mrf.mxu0
    %182 = vmatprep.mubr.f32.mxu0 0.0
    %183 = vmatmul.mubr.f32.gmra.mxu0 %v65
    %v184 = vpop.f32.mrf.mxu0
    %v185 = vadd.f32 %v52, %v184
    %v186 = vpop.f32.mrf.mxu0
    %187 = vmatprep.mubr.f32.mxu0 0.0
    %188 = vmatmul.mubr.f32.gmra.mxu0 %v68
    %v189 = vpop.f32.mrf.mxu0
    %v190 = vadd.f32 %v52, %v189
    %v191 = vpop.f32.mrf.mxu0
    %192 = vmatprep.mubr.f32.mxu0 0.0
    %193 = vmatmul.mubr.f32.gmra.mxu0 %v71
    %v194 = vpop.f32.mrf.mxu0
    %v195 = vadd.f32 %v52, %v194
    %v196 = vpop.f32.mrf.mxu0
    %197 = vmatprep.mubr.f32.mxu0 0.0
    %198 = vmatmul.mubr.f32.gmra.mxu0 %v74
    %v199 = vpop.f32.mrf.mxu0
    %v200 = vadd.f32 %v52, %v199
    %v201 = vpop.f32.mrf.mxu0
    %202 = vmatprep.mubr.f32.mxu0 0.0
    %203 = vmatmul.mubr.f32.gmra.mxu0 %v77
    %v204 = vpop.f32.mrf.mxu0
    %v205 = vadd.f32 %v52, %v204
    %v206 = vpop.f32.mrf.mxu0
    %207 = vmatprep.mubr.f32.mxu0 0.0
    %208 = vmatmul.mubr.f32.gmra.mxu0 %v80
    %v209 = vpop.f32.mrf.mxu0
    %v210 = vadd.f32 %v52, %v209
    %v211 = vpop.f32.mrf.mxu0
    %212 = vmatprep.mubr.f32.mxu0 0.0
    %213 = vmatmul.mubr.f32.gmra.mxu0 %v83
    %v214 = vpop.f32.mrf.mxu0
    %v215 = vadd.f32 %v52, %v214
    %v216 = vpop.f32.mrf.mxu0
    %217 = vmatprep.mubr.f32.mxu0 0.0
    %218 = vmatmul.mubr.f32.gmra.mxu0 %v86
    %v219 = vpop.f32.mrf.mxu0
    %v220 = vadd.f32 %v52, %v219
    %v221 = vpop.f32.mrf.mxu0
    %222 = vmatprep.mubr.f32.mxu0 0.0
    %223 = vmatmul.mubr.f32.gmra.mxu0 %v89
    %v224 = vpop.f32.mrf.mxu0
    %v225 = vadd.f32 %v52, %v224
    %v226 = vpop.f32.mrf.mxu0
    %227 = vmatprep.mubr.f32.mxu0 0.0
    %228 = vmatmul.mubr.f32.gmra.mxu0 %v92
    %v229 = vpop.f32.mrf.mxu0
    %v230 = vadd.f32 %v52, %v229
    %v231 = vpop.f32.mrf.mxu0
    %232 = vmatprep.mubr.f32.mxu0 0.0
    %233 = vmatmul.mubr.f32.gmra.mxu0 %v95
    %v234 = vpop.f32.mrf.mxu0
    %v235 = vadd.f32 %v52, %v234
    %v236 = vpop.f32.mrf.mxu0
    %237 = vmatprep.mubr.f32.mxu0 0.0
    %238 = vmatmul.mubr.f32.gmra.mxu0 %v98
    %v239 = vpop.f32.mrf.mxu0
    %v240 = vadd.f32 %v52, %v239
    %v241 = vpop.f32.mrf.mxu0
    %242 = vmatprep.mubr.f32.mxu0 0.0
    %243 = vmatmul.mubr.f32.gmra.mxu0 %v101
    %v244 = vpop.f32.mrf.mxu0
    %v245 = vadd.f32 %v52, %v244
    %v246 = vpop.f32.mrf.mxu0
    %247 = vdwg.mxu0
    %v248 = vmax.f32 %v170, 0.0
    %v249 = vmax.f32 %v175, 0.0
    %v250 = vmax.f32 %v180, 0.0
    %v251 = vmax.f32 %v185, 0.0
    %v252 = vmax.f32 %v190, 0.0
    %v253 = vmax.f32 %v195, 0.0
    %v254 = vmax.f32 %v200, 0.0
    %v255 = vmax.f32 %v205, 0.0
    %v256 = vmax.f32 %v210, 0.0
    %v257 = vmax.f32 %v215, 0.0
    %v258 = vmax.f32 %v220, 0.0
    %v259 = vmax.f32 %v225, 0.0
    %v260 = vmax.f32 %v230, 0.0
    %v261 = vmax.f32 %v235, 0.0
    %v262 = vmax.f32 %v240, 0.0
    %v263 = vmax.f32 %v245, 0.0
    %v265 = vlaneseq
    %v266 = vshrl.u32 %v265, 7
    %v267 = vsub.s32 0, %v266
    %v268 = vrot.slane %v31, %v267
    %vm270 = vcmask 261120
    %v272 = vsel %vm270, %v248, 0
    %v275 = vsel %vm270, %v249, 0
    %v278 = vsel %vm270, %v250, 0
    %v281 = vsel %vm270, %v251, 0
    %v284 = vsel %vm270, %v252, 0
    %v287 = vsel %vm270, %v253, 0
    %v290 = vsel %vm270, %v254, 0
    %v293 = vsel %vm270, %v255, 0
    %v296 = vsel %vm270, %v256, 0
    %v299 = vsel %vm270, %v257, 0
    %v302 = vsel %vm270, %v258, 0
    %v305 = vsel %vm270, %v259, 0
    %v308 = vsel %vm270, %v260, 0
    %v311 = vsel %vm270, %v261, 0
    %v314 = vsel %vm270, %v262, 0
    %v317 = vsel %vm270, %v263, 0
    %319 = vmatprep.subr.mxu0 0.0
    %320 = vmatpush1.msra.mxu0 0.0
    %321 = vmatprep.subr.mxu0 0.0
    %322 = vmatpush1.msra.mxu0 0.0
    %323 = vmatprep.subr.mxu0 0.0
    %324 = vmatpush1.msra.mxu0 0.0
    %325 = vmatprep.subr.mxu0 0.0
    %326 = vmatpush1.msra.mxu0 0.0
    %327 = vmatprep.subr.mxu0 0.0
    %328 = vmatpush1.msra.mxu0 0.0
    %329 = vmatprep.subr.mxu0 0.0
    %330 = vmatpush1.msra.mxu0 0.0
    %331 = vmatprep.subr.mxu0 0.0
    %332 = vmatpush1.msra.mxu0 0.0
    %333 = vmatprep.subr.mxu0 0.0
    %334 = vmatpush1.msra.mxu0 0.0
    %335 = vmatprep.subr.mxu0 0.0
    %336 = vmatpush1.msra.mxu0 0.0
    %337 = vmatprep.subr.mxu0 0.0
    %338 = vmatpush1.msra.mxu0 0.0
    %339 = vmatprep.subr.mxu0 0.0
    %340 = vmatpush1.msra.mxu0 0.0
    %341 = vmatprep.subr.mxu0 0.0
    %342 = vmatpush1.msra.mxu0 0.0
    %343 = vmatprep.subr.mxu0 0.0
    %344 = vmatpush1.msra.mxu0 %v30
    %345 = vmatprep.subr.mxu0 0.0
    %346 = vmatpush1.msra.mxu0 %v29
    %347 = vmatprep.subr.mxu0 0.0
    %348 = vmatpush1.msra.mxu0 %v28
    %349 = vmatprep.subr.mxu0 0.0
    %350 = vmatpush1.msra.mxu0 %v27
    %351 = vmatprep.subr.mxu0 0.0
    %352 = vmatpush2.msra.mxu0 0.0
    %353 = vmatprep.subr.mxu0 0.0
    %354 = vmatpush2.msra.mxu0 0.0
    %355 = vmatprep.subr.mxu0 0.0
    %356 = vmatpush2.msra.mxu0 0.0
    %357 = vmatprep.subr.mxu0 0.0
    %358 = vmatpush2.msra.mxu0 0.0
    %359 = vmatprep.subr.mxu0 0.0
    %360 = vmatpush2.msra.mxu0 0.0
    %361 = vmatprep.subr.mxu0 0.0
    %362 = vmatpush2.msra.mxu0 0.0
    %363 = vmatprep.subr.mxu0 0.0
    %364 = vmatpush2.msra.mxu0 0.0
    %365 = vmatprep.subr.mxu0 0.0
    %366 = vmatpush2.msra.mxu0 0.0
    %367 = vmatprep.subr.mxu0 0.0
    %368 = vmatpush2.msra.mxu0 0.0
    %369 = vmatprep.subr.mxu0 0.0
    %370 = vmatpush2.msra.mxu0 0.0
    %371 = vmatprep.subr.mxu0 0.0
    %372 = vmatpush2.msra.mxu0 0.0
    %373 = vmatprep.subr.mxu0 0.0
    %374 = vmatpush2.msra.mxu0 0.0
    %375 = vmatprep.subr.mxu0 0.0
    %376 = vmatpush2.msra.mxu0 0.0
    %377 = vmatprep.subr.mxu0 0.0
    %378 = vmatpush2.msra.mxu0 0.0
    %379 = vmatprep.subr.mxu0 0.0
    %380 = vmatpush2.msra.mxu0 0.0
    %381 = vmatprep.subr.mxu0 0.0
    %382 = vmatpush2.msra.mxu0 0.0
    %383 = vmatprep.mubr.f32.mxu0 0.0
    %384 = vmatmul.mubr.f32.gmra.mxu0 %v272
    %v385 = vpop.f32.mrf.mxu0
    %v386 = vadd.f32 %v268, %v385
    %v387 = vpop.f32.mrf.mxu0
    %388 = vmatprep.mubr.f32.mxu0 0.0
    %389 = vmatmul.mubr.f32.gmra.mxu0 %v275
    %v390 = vpop.f32.mrf.mxu0
    %v391 = vadd.f32 %v268, %v390
    %v392 = vpop.f32.mrf.mxu0
    %393 = vmatprep.mubr.f32.mxu0 0.0
    %394 = vmatmul.mubr.f32.gmra.mxu0 %v278
    %v395 = vpop.f32.mrf.mxu0
    %v396 = vadd.f32 %v268, %v395
    %v397 = vpop.f32.mrf.mxu0
    %398 = vmatprep.mubr.f32.mxu0 0.0
    %399 = vmatmul.mubr.f32.gmra.mxu0 %v281
    %v400 = vpop.f32.mrf.mxu0
    %v401 = vadd.f32 %v268, %v400
    %v402 = vpop.f32.mrf.mxu0
    %403 = vmatprep.mubr.f32.mxu0 0.0
    %404 = vmatmul.mubr.f32.gmra.mxu0 %v284
    %v405 = vpop.f32.mrf.mxu0
    %v406 = vadd.f32 %v268, %v405
    %v407 = vpop.f32.mrf.mxu0
    %408 = vmatprep.mubr.f32.mxu0 0.0
    %409 = vmatmul.mubr.f32.gmra.mxu0 %v287
    %v410 = vpop.f32.mrf.mxu0
    %v411 = vadd.f32 %v268, %v410
    %v412 = vpop.f32.mrf.mxu0
    %413 = vmatprep.mubr.f32.mxu0 0.0
    %414 = vmatmul.mubr.f32.gmra.mxu0 %v290
    %v415 = vpop.f32.mrf.mxu0
    %v416 = vadd.f32 %v268, %v415
    %v417 = vpop.f32.mrf.mxu0
    %418 = vmatprep.mubr.f32.mxu0 0.0
    %419 = vmatmul.mubr.f32.gmra.mxu0 %v293
    %v420 = vpop.f32.mrf.mxu0
    %v421 = vadd.f32 %v268, %v420
    %v422 = vpop.f32.mrf.mxu0
    %423 = vmatprep.mubr.f32.mxu0 0.0
    %424 = vmatmul.mubr.f32.gmra.mxu0 %v296
    %v425 = vpop.f32.mrf.mxu0
    %v426 = vadd.f32 %v268, %v425
    %v427 = vpop.f32.mrf.mxu0
    %428 = vmatprep.mubr.f32.mxu0 0.0
    %429 = vmatmul.mubr.f32.gmra.mxu0 %v299
    %v430 = vpop.f32.mrf.mxu0
    %v431 = vadd.f32 %v268, %v430
    %v432 = vpop.f32.mrf.mxu0
    %433 = vmatprep.mubr.f32.mxu0 0.0
    %434 = vmatmul.mubr.f32.gmra.mxu0 %v302
    %v435 = vpop.f32.mrf.mxu0
    %v436 = vadd.f32 %v268, %v435
    %v437 = vpop.f32.mrf.mxu0
    %438 = vmatprep.mubr.f32.mxu0 0.0
    %439 = vmatmul.mubr.f32.gmra.mxu0 %v305
    %v440 = vpop.f32.mrf.mxu0
    %v441 = vadd.f32 %v268, %v440
    %v442 = vpop.f32.mrf.mxu0
    %443 = vmatprep.mubr.f32.mxu0 0.0
    %444 = vmatmul.mubr.f32.gmra.mxu0 %v308
    %v445 = vpop.f32.mrf.mxu0
    %v446 = vadd.f32 %v268, %v445
    %v447 = vpop.f32.mrf.mxu0
    %448 = vmatprep.mubr.f32.mxu0 0.0
    %449 = vmatmul.mubr.f32.gmra.mxu0 %v311
    %v450 = vpop.f32.mrf.mxu0
    %v451 = vadd.f32 %v268, %v450
    %v452 = vpop.f32.mrf.mxu0
    %453 = vmatprep.mubr.f32.mxu0 0.0
    %454 = vmatmul.mubr.f32.gmra.mxu0 %v314
    %v455 = vpop.f32.mrf.mxu0
    %v456 = vadd.f32 %v268, %v455
    %v457 = vpop.f32.mrf.mxu0
    %458 = vmatprep.mubr.f32.mxu0 0.0
    %459 = vmatmul.mubr.f32.gmra.mxu0 %v317
    %v460 = vpop.f32.mrf.mxu0
    %v461 = vadd.f32 %v268, %v460
    %v462 = vpop.f32.mrf.mxu0
    %463 = vdwg.mxu0
    %v464 = vld [vmem:[%s1] sm:$0xff]
    %v465 = vld [vmem:[%s1 + $0x8] sm:$0xff]
    %v466 = vld [vmem:[%s1 + $0x10] sm:$0xff]
    %v467 = vld [vmem:[%s1 + $0x18] sm:$0xff]
    %v468 = vld [vmem:[%s1 + $0x20] sm:$0xff]
    %v469 = vld [vmem:[%s1 + $0x28] sm:$0xff]
    %v470 = vld [vmem:[%s1 + $0x30] sm:$0xff]
    %v471 = vld [vmem:[%s1 + $0x38] sm:$0xff]
    %v472 = vld [vmem:[%s1 + $0x40] sm:$0xff]
    %v473 = vld [vmem:[%s1 + $0x48] sm:$0xff]
    %v474 = vld [vmem:[%s1 + $0x50] sm:$0xff]
    %v475 = vld [vmem:[%s1 + $0x58] sm:$0xff]
    %v476 = vld [vmem:[%s1 + $0x60] sm:$0xff]
    %v477 = vld [vmem:[%s1 + $0x68] sm:$0xff]
    %v478 = vld [vmem:[%s1 + $0x70] sm:$0xff]
    %v479 = vld [vmem:[%s1 + $0x78] sm:$0xff]
    %v481 = vsel %vm54, %v464, 0
    %v484 = vsel %vm54, %v465, 0
    %v487 = vsel %vm54, %v466, 0
    %v490 = vsel %vm54, %v467, 0
    %v493 = vsel %vm54, %v468, 0
    %v496 = vsel %vm54, %v469, 0
    %v499 = vsel %vm54, %v470, 0
    %v502 = vsel %vm54, %v471, 0
    %v505 = vsel %vm54, %v472, 0
    %v508 = vsel %vm54, %v473, 0
    %v511 = vsel %vm54, %v474, 0
    %v514 = vsel %vm54, %v475, 0
    %v517 = vsel %vm54, %v476, 0
    %v520 = vsel %vm54, %v477, 0
    %v523 = vsel %vm54, %v478, 0
    %v526 = vsel %vm54, %v479, 0
    %528 = vmatprep.subr.mxu0 0.0
    %529 = vmatpush1.msra.mxu0 0.0
    %530 = vmatprep.subr.mxu0 0.0
    %531 = vmatpush1.msra.mxu0 0.0
    %532 = vmatprep.subr.mxu0 0.0
    %533 = vmatpush1.msra.mxu0 0.0
    %534 = vmatprep.subr.mxu0 0.0
    %535 = vmatpush1.msra.mxu0 0.0
    %536 = vmatprep.subr.mxu0 0.0
    %537 = vmatpush1.msra.mxu0 0.0
    %538 = vmatprep.subr.mxu0 0.0
    %539 = vmatpush1.msra.mxu0 0.0
    %540 = vmatprep.subr.mxu0 0.0
    %541 = vmatpush1.msra.mxu0 0.0
    %542 = vmatprep.subr.mxu0 0.0
    %543 = vmatpush1.msra.mxu0 0.0
    %544 = vmatprep.subr.mxu0 0.0
    %545 = vmatpush1.msra.mxu0 0.0
    %546 = vmatprep.subr.mxu0 0.0
    %547 = vmatpush1.msra.mxu0 0.0
    %548 = vmatprep.subr.mxu0 0.0
    %549 = vmatpush1.msra.mxu0 0.0
    %550 = vmatprep.subr.mxu0 0.0
    %551 = vmatpush1.msra.mxu0 0.0
    %552 = vmatprep.subr.mxu0 0.0
    %553 = vmatpush1.msra.mxu0 0.0
    %554 = vmatprep.subr.mxu0 0.0
    %555 = vmatpush1.msra.mxu0 0.0
    %556 = vmatprep.subr.mxu0 0.0
    %557 = vmatpush1.msra.mxu0 %v25
    %558 = vmatprep.subr.mxu0 0.0
    %559 = vmatpush1.msra.mxu0 %v24
    %560 = vmatprep.subr.mxu0 0.0
    %561 = vmatpush2.msra.mxu0 0.0
    %562 = vmatprep.subr.mxu0 0.0
    %563 = vmatpush2.msra.mxu0 0.0
    %564 = vmatprep.subr.mxu0 0.0
    %565 = vmatpush2.msra.mxu0 0.0
    %566 = vmatprep.subr.mxu0 0.0
    %567 = vmatpush2.msra.mxu0 0.0
    %568 = vmatprep.subr.mxu0 0.0
    %569 = vmatpush2.msra.mxu0 0.0
    %570 = vmatprep.subr.mxu0 0.0
    %571 = vmatpush2.msra.mxu0 0.0
    %572 = vmatprep.subr.mxu0 0.0
    %573 = vmatpush2.msra.mxu0 0.0
    %574 = vmatprep.subr.mxu0 0.0
    %575 = vmatpush2.msra.mxu0 0.0
    %576 = vmatprep.subr.mxu0 0.0
    %577 = vmatpush2.msra.mxu0 0.0
    %578 = vmatprep.subr.mxu0 0.0
    %579 = vmatpush2.msra.mxu0 0.0
    %580 = vmatprep.subr.mxu0 0.0
    %581 = vmatpush2.msra.mxu0 0.0
    %582 = vmatprep.subr.mxu0 0.0
    %583 = vmatpush2.msra.mxu0 0.0
    %584 = vmatprep.subr.mxu0 0.0
    %585 = vmatpush2.msra.mxu0 0.0
    %586 = vmatprep.subr.mxu0 0.0
    %587 = vmatpush2.msra.mxu0 0.0
    %588 = vmatprep.subr.mxu0 0.0
    %589 = vmatpush2.msra.mxu0 0.0
    %590 = vmatprep.subr.mxu0 0.0
    %591 = vmatpush2.msra.mxu0 0.0
    %592 = vmatprep.mubr.f32.mxu0 0.0
    %593 = vmatmul.mubr.f32.gmra.mxu0 %v481
    %v594 = vpop.f32.mrf.mxu0
    %v595 = vadd.f32 %v52, %v594
    %v596 = vpop.f32.mrf.mxu0
    %597 = vmatprep.mubr.f32.mxu0 0.0
    %598 = vmatmul.mubr.f32.gmra.mxu0 %v484
    %v599 = vpop.f32.mrf.mxu0
    %v600 = vadd.f32 %v52, %v599
    %v601 = vpop.f32.mrf.mxu0
    %602 = vmatprep.mubr.f32.mxu0 0.0
    %603 = vmatmul.mubr.f32.gmra.mxu0 %v487
    %v604 = vpop.f32.mrf.mxu0
    %v605 = vadd.f32 %v52, %v604
    %v606 = vpop.f32.mrf.mxu0
    %607 = vmatprep.mubr.f32.mxu0 0.0
    %608 = vmatmul.mubr.f32.gmra.mxu0 %v490
    %v609 = vpop.f32.mrf.mxu0
    %v610 = vadd.f32 %v52, %v609
    %v611 = vpop.f32.mrf.mxu0
    %612 = vmatprep.mubr.f32.mxu0 0.0
    %613 = vmatmul.mubr.f32.gmra.mxu0 %v493
    %v614 = vpop.f32.mrf.mxu0
    %v615 = vadd.f32 %v52, %v614
    %v616 = vpop.f32.mrf.mxu0
    %617 = vmatprep.mubr.f32.mxu0 0.0
    %618 = vmatmul.mubr.f32.gmra.mxu0 %v496
    %v619 = vpop.f32.mrf.mxu0
    %v620 = vadd.f32 %v52, %v619
    %v621 = vpop.f32.mrf.mxu0
    %622 = vmatprep.mubr.f32.mxu0 0.0
    %623 = vmatmul.mubr.f32.gmra.mxu0 %v499
    %v624 = vpop.f32.mrf.mxu0
    %v625 = vadd.f32 %v52, %v624
    %v626 = vpop.f32.mrf.mxu0
    %627 = vmatprep.mubr.f32.mxu0 0.0
    %628 = vmatmul.mubr.f32.gmra.mxu0 %v502
    %v629 = vpop.f32.mrf.mxu0
    %v630 = vadd.f32 %v52, %v629
    %v631 = vpop.f32.mrf.mxu0
    %632 = vmatprep.mubr.f32.mxu0 0.0
    %633 = vmatmul.mubr.f32.gmra.mxu0 %v505
    %v634 = vpop.f32.mrf.mxu0
    %v635 = vadd.f32 %v52, %v634
    %v636 = vpop.f32.mrf.mxu0
    %637 = vmatprep.mubr.f32.mxu0 0.0
    %638 = vmatmul.mubr.f32.gmra.mxu0 %v508
    %v639 = vpop.f32.mrf.mxu0
    %v640 = vadd.f32 %v52, %v639
    %v641 = vpop.f32.mrf.mxu0
    %642 = vmatprep.mubr.f32.mxu0 0.0
    %643 = vmatmul.mubr.f32.gmra.mxu0 %v511
    %v644 = vpop.f32.mrf.mxu0
    %v645 = vadd.f32 %v52, %v644
    %v646 = vpop.f32.mrf.mxu0
    %647 = vmatprep.mubr.f32.mxu0 0.0
    %648 = vmatmul.mubr.f32.gmra.mxu0 %v514
    %v649 = vpop.f32.mrf.mxu0
    %v650 = vadd.f32 %v52, %v649
    %v651 = vpop.f32.mrf.mxu0
    %652 = vmatprep.mubr.f32.mxu0 0.0
    %653 = vmatmul.mubr.f32.gmra.mxu0 %v517
    %v654 = vpop.f32.mrf.mxu0
    %v655 = vadd.f32 %v52, %v654
    %v656 = vpop.f32.mrf.mxu0
    %657 = vmatprep.mubr.f32.mxu0 0.0
    %658 = vmatmul.mubr.f32.gmra.mxu0 %v520
    %v659 = vpop.f32.mrf.mxu0
    %v660 = vadd.f32 %v52, %v659
    %v661 = vpop.f32.mrf.mxu0
    %662 = vmatprep.mubr.f32.mxu0 0.0
    %663 = vmatmul.mubr.f32.gmra.mxu0 %v523
    %v664 = vpop.f32.mrf.mxu0
    %v665 = vadd.f32 %v52, %v664
    %v666 = vpop.f32.mrf.mxu0
    %667 = vmatprep.mubr.f32.mxu0 0.0
    %668 = vmatmul.mubr.f32.gmra.mxu0 %v526
    %v669 = vpop.f32.mrf.mxu0
    %v670 = vadd.f32 %v52, %v669
    %v671 = vpop.f32.mrf.mxu0
    %672 = vdwg.mxu0
    %v673 = vmax.f32 %v595, 0.0
    %v674 = vmax.f32 %v600, 0.0
    %v675 = vmax.f32 %v605, 0.0
    %v676 = vmax.f32 %v610, 0.0
    %v677 = vmax.f32 %v615, 0.0
    %v678 = vmax.f32 %v620, 0.0
    %v679 = vmax.f32 %v625, 0.0
    %v680 = vmax.f32 %v630, 0.0
    %v681 = vmax.f32 %v635, 0.0
    %v682 = vmax.f32 %v640, 0.0
    %v683 = vmax.f32 %v645, 0.0
    %v684 = vmax.f32 %v650, 0.0
    %v685 = vmax.f32 %v655, 0.0
    %v686 = vmax.f32 %v660, 0.0
    %v687 = vmax.f32 %v665, 0.0
    %v688 = vmax.f32 %v670, 0.0
    %v690 = vsel %vm270, %v673, 0
    %v693 = vsel %vm270, %v674, 0
    %v696 = vsel %vm270, %v675, 0
    %v699 = vsel %vm270, %v676, 0
    %v702 = vsel %vm270, %v677, 0
    %v705 = vsel %vm270, %v678, 0
    %v708 = vsel %vm270, %v679, 0
    %v711 = vsel %vm270, %v680, 0
    %v714 = vsel %vm270, %v681, 0
    %v717 = vsel %vm270, %v682, 0
    %v720 = vsel %vm270, %v683, 0
    %v723 = vsel %vm270, %v684, 0
    %v726 = vsel %vm270, %v685, 0
    %v729 = vsel %vm270, %v686, 0
    %v732 = vsel %vm270, %v687, 0
    %v735 = vsel %vm270, %v688, 0
    %737 = vmatprep.subr.mxu0 0.0
    %738 = vmatpush1.msra.mxu0 0.0
    %739 = vmatprep.subr.mxu0 0.0
    %740 = vmatpush1.msra.mxu0 0.0
    %741 = vmatprep.subr.mxu0 0.0
    %742 = vmatpush1.msra.mxu0 0.0
    %743 = vmatprep.subr.mxu0 0.0
    %744 = vmatpush1.msra.mxu0 0.0
    %745 = vmatprep.subr.mxu0 0.0
    %746 = vmatpush1.msra.mxu0 0.0
    %747 = vmatprep.subr.mxu0 0.0
    %748 = vmatpush1.msra.mxu0 0.0
    %749 = vmatprep.subr.mxu0 0.0
    %750 = vmatpush1.msra.mxu0 0.0
    %751 = vmatprep.subr.mxu0 0.0
    %752 = vmatpush1.msra.mxu0 0.0
    %753 = vmatprep.subr.mxu0 0.0
    %754 = vmatpush1.msra.mxu0 0.0
    %755 = vmatprep.subr.mxu0 0.0
    %756 = vmatpush1.msra.mxu0 0.0
    %757 = vmatprep.subr.mxu0 0.0
    %758 = vmatpush1.msra.mxu0 0.0
    %759 = vmatprep.subr.mxu0 0.0
    %760 = vmatpush1.msra.mxu0 0.0
    %761 = vmatprep.subr.mxu0 0.0
    %762 = vmatpush1.msra.mxu0 %v30
    %763 = vmatprep.subr.mxu0 0.0
    %764 = vmatpush1.msra.mxu0 %v29
    %765 = vmatprep.subr.mxu0 0.0
    %766 = vmatpush1.msra.mxu0 %v28
    %767 = vmatprep.subr.mxu0 0.0
    %768 = vmatpush1.msra.mxu0 %v27
    %769 = vmatprep.subr.mxu0 0.0
    %770 = vmatpush2.msra.mxu0 0.0
    %771 = vmatprep.subr.mxu0 0.0
    %772 = vmatpush2.msra.mxu0 0.0
    %773 = vmatprep.subr.mxu0 0.0
    %774 = vmatpush2.msra.mxu0 0.0
    %775 = vmatprep.subr.mxu0 0.0
    %776 = vmatpush2.msra.mxu0 0.0
    %777 = vmatprep.subr.mxu0 0.0
    %778 = vmatpush2.msra.mxu0 0.0
    %779 = vmatprep.subr.mxu0 0.0
    %780 = vmatpush2.msra.mxu0 0.0
    %781 = vmatprep.subr.mxu0 0.0
    %782 = vmatpush2.msra.mxu0 0.0
    %783 = vmatprep.subr.mxu0 0.0
    %784 = vmatpush2.msra.mxu0 0.0
    %785 = vmatprep.subr.mxu0 0.0
    %786 = vmatpush2.msra.mxu0 0.0
    %787 = vmatprep.subr.mxu0 0.0
    %788 = vmatpush2.msra.mxu0 0.0
    %789 = vmatprep.subr.mxu0 0.0
    %790 = vmatpush2.msra.mxu0 0.0
    %791 = vmatprep.subr.mxu0 0.0
    %792 = vmatpush2.msra.mxu0 0.0
    %793 = vmatprep.subr.mxu0 0.0
    %794 = vmatpush2.msra.mxu0 0.0
    %795 = vmatprep.subr.mxu0 0.0
    %796 = vmatpush2.msra.mxu0 0.0
    %797 = vmatprep.subr.mxu0 0.0
    %798 = vmatpush2.msra.mxu0 0.0
    %799 = vmatprep.subr.mxu0 0.0
    %800 = vmatpush2.msra.mxu0 0.0
    %801 = vmatprep.mubr.f32.mxu0 0.0
    %802 = vmatmul.mubr.f32.gmra.mxu0 %v690
    %v803 = vpop.f32.mrf.mxu0
    %v804 = vadd.f32 %v268, %v803
    %v805 = vpop.f32.mrf.mxu0
    %806 = vmatprep.mubr.f32.mxu0 0.0
    %807 = vmatmul.mubr.f32.gmra.mxu0 %v693
    %v808 = vpop.f32.mrf.mxu0
    %v809 = vadd.f32 %v268, %v808
    %v810 = vpop.f32.mrf.mxu0
    %811 = vmatprep.mubr.f32.mxu0 0.0
    %812 = vmatmul.mubr.f32.gmra.mxu0 %v696
    %v813 = vpop.f32.mrf.mxu0
    %v814 = vadd.f32 %v268, %v813
    %v815 = vpop.f32.mrf.mxu0
    %816 = vmatprep.mubr.f32.mxu0 0.0
    %817 = vmatmul.mubr.f32.gmra.mxu0 %v699
    %v818 = vpop.f32.mrf.mxu0
    %v819 = vadd.f32 %v268, %v818
    %v820 = vpop.f32.mrf.mxu0
    %821 = vmatprep.mubr.f32.mxu0 0.0
    %822 = vmatmul.mubr.f32.gmra.mxu0 %v702
    %v823 = vpop.f32.mrf.mxu0
    %v824 = vadd.f32 %v268, %v823
    %v825 = vpop.f32.mrf.mxu0
    %826 = vmatprep.mubr.f32.mxu0 0.0
    %827 = vmatmul.mubr.f32.gmra.mxu0 %v705
    %v828 = vpop.f32.mrf.mxu0
    %v829 = vadd.f32 %v268, %v828
    %v830 = vpop.f32.mrf.mxu0
    %831 = vmatprep.mubr.f32.mxu0 0.0
    %832 = vmatmul.mubr.f32.gmra.mxu0 %v708
    %v833 = vpop.f32.mrf.mxu0
    %v834 = vadd.f32 %v268, %v833
    %v835 = vpop.f32.mrf.mxu0
    %836 = vmatprep.mubr.f32.mxu0 0.0
    %837 = vmatmul.mubr.f32.gmra.mxu0 %v711
    %v838 = vpop.f32.mrf.mxu0
    %v839 = vadd.f32 %v268, %v838
    %v840 = vpop.f32.mrf.mxu0
    %841 = vmatprep.mubr.f32.mxu0 0.0
    %842 = vmatmul.mubr.f32.gmra.mxu0 %v714
    %v843 = vpop.f32.mrf.mxu0
    %v844 = vadd.f32 %v268, %v843
    %v845 = vpop.f32.mrf.mxu0
    %846 = vmatprep.mubr.f32.mxu0 0.0
    %847 = vmatmul.mubr.f32.gmra.mxu0 %v717
    %v848 = vpop.f32.mrf.mxu0
    %v849 = vadd.f32 %v268, %v848
    %v850 = vpop.f32.mrf.mxu0
    %851 = vmatprep.mubr.f32.mxu0 0.0
    %852 = vmatmul.mubr.f32.gmra.mxu0 %v720
    %v853 = vpop.f32.mrf.mxu0
    %v854 = vadd.f32 %v268, %v853
    %v855 = vpop.f32.mrf.mxu0
    %856 = vmatprep.mubr.f32.mxu0 0.0
    %857 = vmatmul.mubr.f32.gmra.mxu0 %v723
    %v858 = vpop.f32.mrf.mxu0
    %v859 = vadd.f32 %v268, %v858
    %v860 = vpop.f32.mrf.mxu0
    %861 = vmatprep.mubr.f32.mxu0 0.0
    %862 = vmatmul.mubr.f32.gmra.mxu0 %v726
    %v863 = vpop.f32.mrf.mxu0
    %v864 = vadd.f32 %v268, %v863
    %v865 = vpop.f32.mrf.mxu0
    %866 = vmatprep.mubr.f32.mxu0 0.0
    %867 = vmatmul.mubr.f32.gmra.mxu0 %v729
    %v868 = vpop.f32.mrf.mxu0
    %v869 = vadd.f32 %v268, %v868
    %v870 = vpop.f32.mrf.mxu0
    %871 = vmatprep.mubr.f32.mxu0 0.0
    %872 = vmatmul.mubr.f32.gmra.mxu0 %v732
    %v873 = vpop.f32.mrf.mxu0
    %v874 = vadd.f32 %v268, %v873
    %v875 = vpop.f32.mrf.mxu0
    %876 = vmatprep.mubr.f32.mxu0 0.0
    %877 = vmatmul.mubr.f32.gmra.mxu0 %v735
    %v878 = vpop.f32.mrf.mxu0
    %v879 = vadd.f32 %v268, %v878
    %v880 = vpop.f32.mrf.mxu0
    %881 = vdwg.mxu0
    %v882 = vmul.f32 %v386, %v386
    %v883 = vmul.f32 %v391, %v391
    %v884 = vmul.f32 %v396, %v396
    %v885 = vmul.f32 %v401, %v401
    %v886 = vmul.f32 %v406, %v406
    %v887 = vmul.f32 %v411, %v411
    %v888 = vmul.f32 %v416, %v416
    %v889 = vmul.f32 %v421, %v421
    %v890 = vmul.f32 %v426, %v426
    %v891 = vmul.f32 %v431, %v431
    %v892 = vmul.f32 %v436, %v436
    %v893 = vmul.f32 %v441, %v441
    %v894 = vmul.f32 %v446, %v446
    %v895 = vmul.f32 %v451, %v451
    %v896 = vmul.f32 %v456, %v456
    %v897 = vmul.f32 %v461, %v461
    %vm898 = vcmask 64512
    %v899 = vsel %vm898, %v882, 0.0
    %900 = vadd.xlane.f32.xlu0 %v899
    %v901 = vpop.xlane.xlu0 %900
    %v902 = vsel %vm898, %v883, 0.0
    %903 = vadd.xlane.f32.xlu0 %v902
    %v904 = vpop.xlane.xlu0 %903
    %v905 = vsel %vm898, %v884, 0.0
    %906 = vadd.xlane.f32.xlu0 %v905
    %v907 = vpop.xlane.xlu0 %906
    %v908 = vsel %vm898, %v885, 0.0
    %909 = vadd.xlane.f32.xlu0 %v908
    %v910 = vpop.xlane.xlu0 %909
    %v911 = vsel %vm898, %v886, 0.0
    %912 = vadd.xlane.f32.xlu0 %v911
    %v913 = vpop.xlane.xlu0 %912
    %v914 = vsel %vm898, %v887, 0.0
    %915 = vadd.xlane.f32.xlu0 %v914
    %v916 = vpop.xlane.xlu0 %915
    %v917 = vsel %vm898, %v888, 0.0
    %918 = vadd.xlane.f32.xlu0 %v917
    %v919 = vpop.xlane.xlu0 %918
    %v920 = vsel %vm898, %v889, 0.0
    %921 = vadd.xlane.f32.xlu0 %v920
    %v922 = vpop.xlane.xlu0 %921
    %v923 = vsel %vm898, %v890, 0.0
    %924 = vadd.xlane.f32.xlu0 %v923
    %v925 = vpop.xlane.xlu0 %924
    %v926 = vsel %vm898, %v891, 0.0
    %927 = vadd.xlane.f32.xlu0 %v926
    %v928 = vpop.xlane.xlu0 %927
    %v929 = vsel %vm898, %v892, 0.0
    %930 = vadd.xlane.f32.xlu0 %v929
    %v931 = vpop.xlane.xlu0 %930
    %v932 = vsel %vm898, %v893, 0.0
    %933 = vadd.xlane.f32.xlu0 %v932
    %v934 = vpop.xlane.xlu0 %933
    %v935 = vsel %vm898, %v894, 0.0
    %936 = vadd.xlane.f32.xlu0 %v935
    %v937 = vpop.xlane.xlu0 %936
    %v938 = vsel %vm898, %v895, 0.0
    %939 = vadd.xlane.f32.xlu0 %v938
    %v940 = vpop.xlane.xlu0 %939
    %v941 = vsel %vm898, %v896, 0.0
    %942 = vadd.xlane.f32.xlu0 %v941
    %v943 = vpop.xlane.xlu0 %942
    %v944 = vsel %vm898, %v897, 0.0
    %945 = vadd.xlane.f32.xlu0 %v944
    %v946 = vpop.xlane.xlu0 %945
    %v947 = vmul.f32 %v804, %v804
    %v948 = vmul.f32 %v809, %v809
    %v949 = vmul.f32 %v814, %v814
    %v950 = vmul.f32 %v819, %v819
    %v951 = vmul.f32 %v824, %v824
    %v952 = vmul.f32 %v829, %v829
    %v953 = vmul.f32 %v834, %v834
    %v954 = vmul.f32 %v839, %v839
    %v955 = vmul.f32 %v844, %v844
    %v956 = vmul.f32 %v849, %v849
    %v957 = vmul.f32 %v854, %v854
    %v958 = vmul.f32 %v859, %v859
    %v959 = vmul.f32 %v864, %v864
    %v960 = vmul.f32 %v869, %v869
    %v961 = vmul.f32 %v874, %v874
    %v962 = vmul.f32 %v879, %v879
    %v964 = vsel %vm898, 1.0, 0
    %v967 = vsel %vm898, %v947, 0
    %v970 = vsel %vm898, %v948, 0
    %v973 = vsel %vm898, %v949, 0
    %v976 = vsel %vm898, %v950, 0
    %v979 = vsel %vm898, %v951, 0
    %v982 = vsel %vm898, %v952, 0
    %v985 = vsel %vm898, %v953, 0
    %v988 = vsel %vm898, %v954, 0
    %v991 = vsel %vm898, %v955, 0
    %v994 = vsel %vm898, %v956, 0
    %v997 = vsel %vm898, %v957, 0
    %v1000 = vsel %vm898, %v958, 0
    %v1003 = vsel %vm898, %v959, 0
    %v1006 = vsel %vm898, %v960, 0
    %v1009 = vsel %vm898, %v961, 0
    %v1012 = vsel %vm898, %v962, 0
    %1014 = vmatprep.subr.mxu0 0.0
    %1015 = vmatpush1.xpose.msra.mxu0 %v1012
    %1016 = vmatprep.subr.mxu0 0.0
    %1017 = vmatpush1.xpose.msra.mxu0 %v1009
    %1018 = vmatprep.subr.mxu0 0.0
    %1019 = vmatpush1.xpose.msra.mxu0 %v1006
    %1020 = vmatprep.subr.mxu0 0.0
    %1021 = vmatpush1.xpose.msra.mxu0 %v1003
    %1022 = vmatprep.subr.mxu0 0.0
    %1023 = vmatpush1.xpose.msra.mxu0 %v1000
    %1024 = vmatprep.subr.mxu0 0.0
    %1025 = vmatpush1.xpose.msra.mxu0 %v997
    %1026 = vmatprep.subr.mxu0 0.0
    %1027 = vmatpush1.xpose.msra.mxu0 %v994
    %1028 = vmatprep.subr.mxu0 0.0
    %1029 = vmatpush1.xpose.msra.mxu0 %v991
    %1030 = vmatprep.subr.mxu0 0.0
    %1031 = vmatpush1.xpose.msra.mxu0 %v988
    %1032 = vmatprep.subr.mxu0 0.0
    %1033 = vmatpush1.xpose.msra.mxu0 %v985
    %1034 = vmatprep.subr.mxu0 0.0
    %1035 = vmatpush1.xpose.msra.mxu0 %v982
    %1036 = vmatprep.subr.mxu0 0.0
    %1037 = vmatpush1.xpose.msra.mxu0 %v979
    %1038 = vmatprep.subr.mxu0 0.0
    %1039 = vmatpush1.xpose.msra.mxu0 %v976
    %1040 = vmatprep.subr.mxu0 0.0
    %1041 = vmatpush1.xpose.msra.mxu0 %v973
    %1042 = vmatprep.subr.mxu0 0.0
    %1043 = vmatpush1.xpose.msra.mxu0 %v970
    %1044 = vmatprep.subr.mxu0 0.0
    %1045 = vmatpush1.xpose.msra.mxu0 %v967
    %1046 = vmatprep.subr.mxu0 0.0
    %1047 = vmatpush2.xpose.msra.mxu0 0.0
    %1048 = vmatprep.subr.mxu0 0.0
    %1049 = vmatpush2.xpose.msra.mxu0 0.0
    %1050 = vmatprep.subr.mxu0 0.0
    %1051 = vmatpush2.xpose.msra.mxu0 0.0
    %1052 = vmatprep.subr.mxu0 0.0
    %1053 = vmatpush2.xpose.msra.mxu0 0.0
    %1054 = vmatprep.subr.mxu0 0.0
    %1055 = vmatpush2.xpose.msra.mxu0 0.0
    %1056 = vmatprep.subr.mxu0 0.0
    %1057 = vmatpush2.xpose.msra.mxu0 0.0
    %1058 = vmatprep.subr.mxu0 0.0
    %1059 = vmatpush2.xpose.msra.mxu0 0.0
    %1060 = vmatprep.subr.mxu0 0.0
    %1061 = vmatpush2.xpose.msra.mxu0 0.0
    %1062 = vmatprep.subr.mxu0 0.0
    %1063 = vmatpush2.xpose.msra.mxu0 0.0
    %1064 = vmatprep.subr.mxu0 0.0
    %1065 = vmatpush2.xpose.msra.mxu0 0.0
    %1066 = vmatprep.subr.mxu0 0.0
    %1067 = vmatpush2.xpose.msra.mxu0 0.0
    %1068 = vmatprep.subr.mxu0 0.0
    %1069 = vmatpush2.xpose.msra.mxu0 0.0
    %1070 = vmatprep.subr.mxu0 0.0
    %1071 = vmatpush2.xpose.msra.mxu0 0.0
    %1072 = vmatprep.subr.mxu0 0.0
    %1073 = vmatpush2.xpose.msra.mxu0 0.0
    %1074 = vmatprep.subr.mxu0 0.0
    %1075 = vmatpush2.xpose.msra.mxu0 0.0
    %1076 = vmatprep.subr.mxu0 0.0
    %1077 = vmatpush2.xpose.msra.mxu0 0.0
    %1078 = vmatprep.mubr.f32.mxu0 0.0
    %1079 = vmatmul.mubr.f32.gmra.mxu0 %v964
    %v1080 = vpop.f32.mrf.mxu0
    %v1081 = vadd.f32 0.0, %v1080
    %v1082 = vpop.f32.mrf.mxu0
    %1083 = vdwg.mxu0
    %v1085 = vsel %vm898, %v386, 0
    %v1088 = vsel %vm898, %v391, 0
    %v1091 = vsel %vm898, %v396, 0
    %v1094 = vsel %vm898, %v401, 0
    %v1097 = vsel %vm898, %v406, 0
    %v1100 = vsel %vm898, %v411, 0
    %v1103 = vsel %vm898, %v416, 0
    %v1106 = vsel %vm898, %v421, 0
    %v1109 = vsel %vm898, %v426, 0
    %v1112 = vsel %vm898, %v431, 0
    %v1115 = vsel %vm898, %v436, 0
    %v1118 = vsel %vm898, %v441, 0
    %v1121 = vsel %vm898, %v446, 0
    %v1124 = vsel %vm898, %v451, 0
    %v1127 = vsel %vm898, %v456, 0
    %v1130 = vsel %vm898, %v461, 0
    %v1133 = vsel %vm898, %v804, 0
    %v1136 = vsel %vm898, %v809, 0
    %v1139 = vsel %vm898, %v814, 0
    %v1142 = vsel %vm898, %v819, 0
    %v1145 = vsel %vm898, %v824, 0
    %v1148 = vsel %vm898, %v829, 0
    %v1151 = vsel %vm898, %v834, 0
    %v1154 = vsel %vm898, %v839, 0
    %v1157 = vsel %vm898, %v844, 0
    %v1160 = vsel %vm898, %v849, 0
    %v1163 = vsel %vm898, %v854, 0
    %v1166 = vsel %vm898, %v859, 0
    %v1169 = vsel %vm898, %v864, 0
    %v1172 = vsel %vm898, %v869, 0
    %v1175 = vsel %vm898, %v874, 0
    %v1178 = vsel %vm898, %v879, 0
    %1180 = vmatprep.subr.mxu0 0.0
    %1181 = vmatpush1.xpose.msra.mxu0 %v1178
    %1182 = vmatprep.subr.mxu0 0.0
    %1183 = vmatpush1.xpose.msra.mxu0 %v1175
    %1184 = vmatprep.subr.mxu0 0.0
    %1185 = vmatpush1.xpose.msra.mxu0 %v1172
    %1186 = vmatprep.subr.mxu0 0.0
    %1187 = vmatpush1.xpose.msra.mxu0 %v1169
    %1188 = vmatprep.subr.mxu0 0.0
    %1189 = vmatpush1.xpose.msra.mxu0 %v1166
    %1190 = vmatprep.subr.mxu0 0.0
    %1191 = vmatpush1.xpose.msra.mxu0 %v1163
    %1192 = vmatprep.subr.mxu0 0.0
    %1193 = vmatpush1.xpose.msra.mxu0 %v1160
    %1194 = vmatprep.subr.mxu0 0.0
    %1195 = vmatpush1.xpose.msra.mxu0 %v1157
    %1196 = vmatprep.subr.mxu0 0.0
    %1197 = vmatpush1.xpose.msra.mxu0 %v1154
    %1198 = vmatprep.subr.mxu0 0.0
    %1199 = vmatpush1.xpose.msra.mxu0 %v1151
    %1200 = vmatprep.subr.mxu0 0.0
    %1201 = vmatpush1.xpose.msra.mxu0 %v1148
    %1202 = vmatprep.subr.mxu0 0.0
    %1203 = vmatpush1.xpose.msra.mxu0 %v1145
    %1204 = vmatprep.subr.mxu0 0.0
    %1205 = vmatpush1.xpose.msra.mxu0 %v1142
    %1206 = vmatprep.subr.mxu0 0.0
    %1207 = vmatpush1.xpose.msra.mxu0 %v1139
    %1208 = vmatprep.subr.mxu0 0.0
    %1209 = vmatpush1.xpose.msra.mxu0 %v1136
    %1210 = vmatprep.subr.mxu0 0.0
    %1211 = vmatpush1.xpose.msra.mxu0 %v1133
    %1212 = vmatprep.subr.mxu0 0.0
    %1213 = vmatpush2.xpose.msra.mxu0 0.0
    %1214 = vmatprep.subr.mxu0 0.0
    %1215 = vmatpush2.xpose.msra.mxu0 0.0
    %1216 = vmatprep.subr.mxu0 0.0
    %1217 = vmatpush2.xpose.msra.mxu0 0.0
    %1218 = vmatprep.subr.mxu0 0.0
    %1219 = vmatpush2.xpose.msra.mxu0 0.0
    %1220 = vmatprep.subr.mxu0 0.0
    %1221 = vmatpush2.xpose.msra.mxu0 0.0
    %1222 = vmatprep.subr.mxu0 0.0
    %1223 = vmatpush2.xpose.msra.mxu0 0.0
    %1224 = vmatprep.subr.mxu0 0.0
    %1225 = vmatpush2.xpose.msra.mxu0 0.0
    %1226 = vmatprep.subr.mxu0 0.0
    %1227 = vmatpush2.xpose.msra.mxu0 0.0
    %1228 = vmatprep.subr.mxu0 0.0
    %1229 = vmatpush2.xpose.msra.mxu0 0.0
    %1230 = vmatprep.subr.mxu0 0.0
    %1231 = vmatpush2.xpose.msra.mxu0 0.0
    %1232 = vmatprep.subr.mxu0 0.0
    %1233 = vmatpush2.xpose.msra.mxu0 0.0
    %1234 = vmatprep.subr.mxu0 0.0
    %1235 = vmatpush2.xpose.msra.mxu0 0.0
    %1236 = vmatprep.subr.mxu0 0.0
    %1237 = vmatpush2.xpose.msra.mxu0 0.0
    %1238 = vmatprep.subr.mxu0 0.0
    %1239 = vmatpush2.xpose.msra.mxu0 0.0
    %1240 = vmatprep.subr.mxu0 0.0
    %1241 = vmatpush2.xpose.msra.mxu0 0.0
    %1242 = vmatprep.subr.mxu0 0.0
    %1243 = vmatpush2.xpose.msra.mxu0 0.0
    %1244 = vmatprep.mubr.f32.mxu0 0.0
    %1245 = vmatmul.mubr.f32.gmra.mxu0 %v1085
    %v1246 = vpop.f32.mrf.mxu0
    %v1247 = vadd.f32 0.0, %v1246
    %v1248 = vpop.f32.mrf.mxu0
    %1249 = vmatprep.mubr.f32.mxu0 0.0
    %1250 = vmatmul.mubr.f32.gmra.mxu0 %v1088
    %v1251 = vpop.f32.mrf.mxu0
    %v1252 = vadd.f32 0.0, %v1251
    %v1253 = vpop.f32.mrf.mxu0
    %1254 = vmatprep.mubr.f32.mxu0 0.0
    %1255 = vmatmul.mubr.f32.gmra.mxu0 %v1091
    %v1256 = vpop.f32.mrf.mxu0
    %v1257 = vadd.f32 0.0, %v1256
    %v1258 = vpop.f32.mrf.mxu0
    %1259 = vmatprep.mubr.f32.mxu0 0.0
    %1260 = vmatmul.mubr.f32.gmra.mxu0 %v1094
    %v1261 = vpop.f32.mrf.mxu0
    %v1262 = vadd.f32 0.0, %v1261
    %v1263 = vpop.f32.mrf.mxu0
    %1264 = vmatprep.mubr.f32.mxu0 0.0
    %1265 = vmatmul.mubr.f32.gmra.mxu0 %v1097
    %v1266 = vpop.f32.mrf.mxu0
    %v1267 = vadd.f32 0.0, %v1266
    %v1268 = vpop.f32.mrf.mxu0
    %1269 = vmatprep.mubr.f32.mxu0 0.0
    %1270 = vmatmul.mubr.f32.gmra.mxu0 %v1100
    %v1271 = vpop.f32.mrf.mxu0
    %v1272 = vadd.f32 0.0, %v1271
    %v1273 = vpop.f32.mrf.mxu0
    %1274 = vmatprep.mubr.f32.mxu0 0.0
    %1275 = vmatmul.mubr.f32.gmra.mxu0 %v1103
    %v1276 = vpop.f32.mrf.mxu0
    %v1277 = vadd.f32 0.0, %v1276
    %v1278 = vpop.f32.mrf.mxu0
    %1279 = vmatprep.mubr.f32.mxu0 0.0
    %1280 = vmatmul.mubr.f32.gmra.mxu0 %v1106
    %v1281 = vpop.f32.mrf.mxu0
    %v1282 = vadd.f32 0.0, %v1281
    %v1283 = vpop.f32.mrf.mxu0
    %1284 = vmatprep.mubr.f32.mxu0 0.0
    %1285 = vmatmul.mubr.f32.gmra.mxu0 %v1109
    %v1286 = vpop.f32.mrf.mxu0
    %v1287 = vadd.f32 0.0, %v1286
    %v1288 = vpop.f32.mrf.mxu0
    %1289 = vmatprep.mubr.f32.mxu0 0.0
    %1290 = vmatmul.mubr.f32.gmra.mxu0 %v1112
    %v1291 = vpop.f32.mrf.mxu0
    %v1292 = vadd.f32 0.0, %v1291
    %v1293 = vpop.f32.mrf.mxu0
    %1294 = vmatprep.mubr.f32.mxu0 0.0
    %1295 = vmatmul.mubr.f32.gmra.mxu0 %v1115
    %v1296 = vpop.f32.mrf.mxu0
    %v1297 = vadd.f32 0.0, %v1296
    %v1298 = vpop.f32.mrf.mxu0
    %1299 = vmatprep.mubr.f32.mxu0 0.0
    %1300 = vmatmul.mubr.f32.gmra.mxu0 %v1118
    %v1301 = vpop.f32.mrf.mxu0
    %v1302 = vadd.f32 0.0, %v1301
    %v1303 = vpop.f32.mrf.mxu0
    %1304 = vmatprep.mubr.f32.mxu0 0.0
    %1305 = vmatmul.mubr.f32.gmra.mxu0 %v1121
    %v1306 = vpop.f32.mrf.mxu0
    %v1307 = vadd.f32 0.0, %v1306
    %v1308 = vpop.f32.mrf.mxu0
    %1309 = vmatprep.mubr.f32.mxu0 0.0
    %1310 = vmatmul.mubr.f32.gmra.mxu0 %v1124
    %v1311 = vpop.f32.mrf.mxu0
    %v1312 = vadd.f32 0.0, %v1311
    %v1313 = vpop.f32.mrf.mxu0
    %1314 = vmatprep.mubr.f32.mxu0 0.0
    %1315 = vmatmul.mubr.f32.gmra.mxu0 %v1127
    %v1316 = vpop.f32.mrf.mxu0
    %v1317 = vadd.f32 0.0, %v1316
    %v1318 = vpop.f32.mrf.mxu0
    %1319 = vmatprep.mubr.f32.mxu0 0.0
    %1320 = vmatmul.mubr.f32.gmra.mxu0 %v1130
    %v1321 = vpop.f32.mrf.mxu0
    %v1322 = vadd.f32 0.0, %v1321
    %v1323 = vpop.f32.mrf.mxu0
    %1324 = vdwg.mxu0
    %v1325 = vlaneseq
    %v1326 = vshrl.u32 %v1325, 7
    %v1327 = vsub.s32 0, %v1326
    %v1328 = vrot.slane %v1081, %v1327
    %v1329 = vadd.f32 %v901, %v1328
    %v1330 = vadd.f32 %v904, %v1328
    %v1331 = vadd.f32 %v907, %v1328
    %v1332 = vadd.f32 %v910, %v1328
    %v1333 = vadd.f32 %v913, %v1328
    %v1334 = vadd.f32 %v916, %v1328
    %v1335 = vadd.f32 %v919, %v1328
    %v1336 = vadd.f32 %v922, %v1328
    %v1337 = vadd.f32 %v925, %v1328
    %v1338 = vadd.f32 %v928, %v1328
    %v1339 = vadd.f32 %v931, %v1328
    %v1340 = vadd.f32 %v934, %v1328
    %v1341 = vadd.f32 %v937, %v1328
    %v1342 = vadd.f32 %v940, %v1328
    %v1343 = vadd.f32 %v943, %v1328
    %v1344 = vadd.f32 %v946, %v1328
    %v1345 = vmul.f32 %v1247, 2.0
    %v1346 = vmul.f32 %v1252, 2.0
    %v1347 = vmul.f32 %v1257, 2.0
    %v1348 = vmul.f32 %v1262, 2.0
    %v1349 = vmul.f32 %v1267, 2.0
    %v1350 = vmul.f32 %v1272, 2.0
    %v1351 = vmul.f32 %v1277, 2.0
    %v1352 = vmul.f32 %v1282, 2.0
    %v1353 = vmul.f32 %v1287, 2.0
    %v1354 = vmul.f32 %v1292, 2.0
    %v1355 = vmul.f32 %v1297, 2.0
    %v1356 = vmul.f32 %v1302, 2.0
    %v1357 = vmul.f32 %v1307, 2.0
    %v1358 = vmul.f32 %v1312, 2.0
    %v1359 = vmul.f32 %v1317, 2.0
    %v1360 = vmul.f32 %v1322, 2.0
    %v1361 = vsub.f32 %v1329, %v1345
    %v1362 = vsub.f32 %v1330, %v1346
    %v1363 = vsub.f32 %v1331, %v1347
    %v1364 = vsub.f32 %v1332, %v1348
    %v1365 = vsub.f32 %v1333, %v1349
    %v1366 = vsub.f32 %v1334, %v1350
    %v1367 = vsub.f32 %v1335, %v1351
    %v1368 = vsub.f32 %v1336, %v1352
    %v1369 = vsub.f32 %v1337, %v1353
    %v1370 = vsub.f32 %v1338, %v1354
    %v1371 = vsub.f32 %v1339, %v1355
    %v1372 = vsub.f32 %v1340, %v1356
    %v1373 = vsub.f32 %v1341, %v1357
    %v1374 = vsub.f32 %v1342, %v1358
    %v1375 = vsub.f32 %v1343, %v1359
    %v1376 = vsub.f32 %v1344, %v1360
    %v1377 = vmax.f32 %v1361, 0.0
    %v1378 = vmax.f32 %v1362, 0.0
    %v1379 = vmax.f32 %v1363, 0.0
    %v1380 = vmax.f32 %v1364, 0.0
    %v1381 = vmax.f32 %v1365, 0.0
    %v1382 = vmax.f32 %v1366, 0.0
    %v1383 = vmax.f32 %v1367, 0.0
    %v1384 = vmax.f32 %v1368, 0.0
    %v1385 = vmax.f32 %v1369, 0.0
    %v1386 = vmax.f32 %v1370, 0.0
    %v1387 = vmax.f32 %v1371, 0.0
    %v1388 = vmax.f32 %v1372, 0.0
    %v1389 = vmax.f32 %v1373, 0.0
    %v1390 = vmax.f32 %v1374, 0.0
    %v1391 = vmax.f32 %v1375, 0.0
    %v1392 = vmax.f32 %v1376, 0.0
    %v1393 = vmul.f32 %v1377, -0.5
    %v1394 = vmul.f32 %v1378, -0.5
    %v1395 = vmul.f32 %v1379, -0.5
    %v1396 = vmul.f32 %v1380, -0.5
    %v1397 = vmul.f32 %v1381, -0.5
    %v1398 = vmul.f32 %v1382, -0.5
    %v1399 = vmul.f32 %v1383, -0.5
    %v1400 = vmul.f32 %v1384, -0.5
    %v1401 = vmul.f32 %v1385, -0.5
    %v1402 = vmul.f32 %v1386, -0.5
    %v1403 = vmul.f32 %v1387, -0.5
    %v1404 = vmul.f32 %v1388, -0.5
    %v1405 = vmul.f32 %v1389, -0.5
    %v1406 = vmul.f32 %v1390, -0.5
    %v1407 = vmul.f32 %v1391, -0.5
    %v1408 = vmul.f32 %v1392, -0.5
    %v1409 = vadd.f32 %v1393, 0.0
    %v1410 = vadd.f32 %v1394, 0.0
    %v1411 = vadd.f32 %v1395, 0.0
    %v1412 = vadd.f32 %v1396, 0.0
    %v1413 = vadd.f32 %v1397, 0.0
    %v1414 = vadd.f32 %v1398, 0.0
    %v1415 = vadd.f32 %v1399, 0.0
    %v1416 = vadd.f32 %v1400, 0.0
    %v1417 = vadd.f32 %v1401, 0.0
    %v1418 = vadd.f32 %v1402, 0.0
    %v1419 = vadd.f32 %v1403, 0.0
    %v1420 = vadd.f32 %v1404, 0.0
    %v1421 = vadd.f32 %v1405, 0.0
    %v1422 = vadd.f32 %v1406, 0.0
    %v1423 = vadd.f32 %v1407, 0.0
    %v1424 = vadd.f32 %v1408, 0.0
    %v1425 = vmul.f32 %v1409, 1.442695
    %v1426 = vpow.pop %v1425
    %v1427 = vmul.f32 %v1410, 1.442695
    %v1428 = vpow.pop %v1427
    %v1429 = vmul.f32 %v1411, 1.442695
    %v1430 = vpow.pop %v1429
    %v1431 = vmul.f32 %v1412, 1.442695
    %v1432 = vpow.pop %v1431
    %v1433 = vmul.f32 %v1413, 1.442695
    %v1434 = vpow.pop %v1433
    %v1435 = vmul.f32 %v1414, 1.442695
    %v1436 = vpow.pop %v1435
    %v1437 = vmul.f32 %v1415, 1.442695
    %v1438 = vpow.pop %v1437
    %v1439 = vmul.f32 %v1416, 1.442695
    %v1440 = vpow.pop %v1439
    %v1441 = vmul.f32 %v1417, 1.442695
    %v1442 = vpow.pop %v1441
    %v1443 = vmul.f32 %v1418, 1.442695
    %v1444 = vpow.pop %v1443
    %v1445 = vmul.f32 %v1419, 1.442695
    %v1446 = vpow.pop %v1445
    %v1447 = vmul.f32 %v1420, 1.442695
    %v1448 = vpow.pop %v1447
    %v1449 = vmul.f32 %v1421, 1.442695
    %v1450 = vpow.pop %v1449
    %v1451 = vmul.f32 %v1422, 1.442695
    %v1452 = vpow.pop %v1451
    %v1453 = vmul.f32 %v1423, 1.442695
    %v1454 = vpow.pop %v1453
    %v1455 = vmul.f32 %v1424, 1.442695
    %v1456 = vpow.pop %v1455
    %1457 = vst [vmem:[#allocation2] sm:$0xff] %v1426
    %1458 = vst [vmem:[#allocation2 + $0x8] sm:$0xff] %v1428
    %1459 = vst [vmem:[#allocation2 + $0x10] sm:$0xff] %v1430
    %1460 = vst [vmem:[#allocation2 + $0x18] sm:$0xff] %v1432
    %1461 = vst [vmem:[#allocation2 + $0x20] sm:$0xff] %v1434
    %1462 = vst [vmem:[#allocation2 + $0x28] sm:$0xff] %v1436
    %1463 = vst [vmem:[#allocation2 + $0x30] sm:$0xff] %v1438
    %1464 = vst [vmem:[#allocation2 + $0x38] sm:$0xff] %v1440
    %1465 = vst [vmem:[#allocation2 + $0x40] sm:$0xff] %v1442
    %1466 = vst [vmem:[#allocation2 + $0x48] sm:$0xff] %v1444
    %1467 = vst [vmem:[#allocation2 + $0x50] sm:$0xff] %v1446
    %1468 = vst [vmem:[#allocation2 + $0x58] sm:$0xff] %v1448
    %1469 = vst [vmem:[#allocation2 + $0x60] sm:$0xff] %v1450
    %1470 = vst [vmem:[#allocation2 + $0x68] sm:$0xff] %v1452
    %1471 = vst [vmem:[#allocation2 + $0x70] sm:$0xff] %v1454
    %1472 = vst [vmem:[#allocation2 + $0x78] sm:$0xff] %v1456
    %p1473 = scmp.eq.s32.totalorder 0, 0
    // Predicated region
    $region26: #{tpu_custom_call.1} parent=1 // pred_check
      %p1474 = pneg %p1473
    $region27: #{tpu_custom_call.1} parent=1 // pred_check_branch
      %1476 = sbr.rel (%p1474) target = $region29
    $region28: #{tpu_custom_call.1} parent=1 // pred_region
      %v1477 = vlaneseq
      %v1478 = vshrl.u32 %v1477, 7
      %v1479 = vadd.s32 %v1478, 8
      %v1480 = vadd.s32 %v1478, 16
      %v1481 = vadd.s32 %v1478, 24
      %v1482 = vadd.s32 %v1478, 32
      %v1483 = vadd.s32 %v1478, 40
      %v1484 = vadd.s32 %v1478, 48
      %v1485 = vadd.s32 %v1478, 56
      %v1486 = vadd.s32 %v1478, 64
      %v1487 = vadd.s32 %v1478, 72
      %v1488 = vadd.s32 %v1478, 80
      %v1489 = vadd.s32 %v1478, 88
      %v1490 = vadd.s32 %v1478, 96
      %v1491 = vadd.s32 %v1478, 104
      %v1492 = vadd.s32 %v1478, 112
      %v1493 = vadd.s32 %v1478, 120
      %v1494 = vlaneseq
      %v1495 = vand.u32 %v1494, 127
      %v1496 = vld [vmem:[#allocation2] sm:$0xff]
      %v1497 = vld [vmem:[#allocation2 + $0x8] sm:$0xff]
      %v1498 = vld [vmem:[#allocation2 + $0x10] sm:$0xff]
      %v1499 = vld [vmem:[#allocation2 + $0x18] sm:$0xff]
      %v1500 = vld [vmem:[#allocation2 + $0x20] sm:$0xff]
      %v1501 = vld [vmem:[#allocation2 + $0x28] sm:$0xff]
      %v1502 = vld [vmem:[#allocation2 + $0x30] sm:$0xff]
      %v1503 = vld [vmem:[#allocation2 + $0x38] sm:$0xff]
      %v1504 = vld [vmem:[#allocation2 + $0x40] sm:$0xff]
      %v1505 = vld [vmem:[#allocation2 + $0x48] sm:$0xff]
      %v1506 = vld [vmem:[#allocation2 + $0x50] sm:$0xff]
      %v1507 = vld [vmem:[#allocation2 + $0x58] sm:$0xff]
      %v1508 = vld [vmem:[#allocation2 + $0x60] sm:$0xff]
      %v1509 = vld [vmem:[#allocation2 + $0x68] sm:$0xff]
      %v1510 = vld [vmem:[#allocation2 + $0x70] sm:$0xff]
      %v1511 = vld [vmem:[#allocation2 + $0x78] sm:$0xff]
      %vm1512 = vcmp.eq.s32.totalorder %v1478, %v1495
      %vm1513 = vcmp.eq.s32.totalorder %v1479, %v1495
      %vm1514 = vcmp.eq.s32.totalorder %v1480, %v1495
      %vm1515 = vcmp.eq.s32.totalorder %v1481, %v1495
      %vm1516 = vcmp.eq.s32.totalorder %v1482, %v1495
      %vm1517 = vcmp.eq.s32.totalorder %v1483, %v1495
      %vm1518 = vcmp.eq.s32.totalorder %v1484, %v1495
      %vm1519 = vcmp.eq.s32.totalorder %v1485, %v1495
      %vm1520 = vcmp.eq.s32.totalorder %v1486, %v1495
      %vm1521 = vcmp.eq.s32.totalorder %v1487, %v1495
      %vm1522 = vcmp.eq.s32.totalorder %v1488, %v1495
      %vm1523 = vcmp.eq.s32.totalorder %v1489, %v1495
      %vm1524 = vcmp.eq.s32.totalorder %v1490, %v1495
      %vm1525 = vcmp.eq.s32.totalorder %v1491, %v1495
      %vm1526 = vcmp.eq.s32.totalorder %v1492, %v1495
      %vm1527 = vcmp.eq.s32.totalorder %v1493, %v1495
      %v1528 = vsel %vm1512, 0.01, 0.0
      %v1529 = vsel %vm1513, 0.01, 0.0
      %v1530 = vsel %vm1514, 0.01, 0.0
      %v1531 = vsel %vm1515, 0.01, 0.0
      %v1532 = vsel %vm1516, 0.01, 0.0
      %v1533 = vsel %vm1517, 0.01, 0.0
      %v1534 = vsel %vm1518, 0.01, 0.0
      %v1535 = vsel %vm1519, 0.01, 0.0
      %v1536 = vsel %vm1520, 0.01, 0.0
      %v1537 = vsel %vm1521, 0.01, 0.0
      %v1538 = vsel %vm1522, 0.01, 0.0
      %v1539 = vsel %vm1523, 0.01, 0.0
      %v1540 = vsel %vm1524, 0.01, 0.0
      %v1541 = vsel %vm1525, 0.01, 0.0
      %v1542 = vsel %vm1526, 0.01, 0.0
      %v1543 = vsel %vm1527, 0.01, 0.0
      %v1544 = vadd.f32 %v1496, %v1528
      %v1545 = vadd.f32 %v1497, %v1529
      %v1546 = vadd.f32 %v1498, %v1530
      %v1547 = vadd.f32 %v1499, %v1531
      %v1548 = vadd.f32 %v1500, %v1532
      %v1549 = vadd.f32 %v1501, %v1533
      %v1550 = vadd.f32 %v1502, %v1534
      %v1551 = vadd.f32 %v1503, %v1535
      %v1552 = vadd.f32 %v1504, %v1536
      %v1553 = vadd.f32 %v1505, %v1537
      %v1554 = vadd.f32 %v1506, %v1538
      %v1555 = vadd.f32 %v1507, %v1539
      %v1556 = vadd.f32 %v1508, %v1540
      %v1557 = vadd.f32 %v1509, %v1541
      %v1558 = vadd.f32 %v1510, %v1542
      %v1559 = vadd.f32 %v1511, %v1543
      %1560 = vst [vmem:[#allocation2] sm:$0xff] %v1544
      %1561 = vst [vmem:[#allocation2 + $0x8] sm:$0xff] %v1545
      %1562 = vst [vmem:[#allocation2 + $0x10] sm:$0xff] %v1546
      %1563 = vst [vmem:[#allocation2 + $0x18] sm:$0xff] %v1547
      %1564 = vst [vmem:[#allocation2 + $0x20] sm:$0xff] %v1548
      %1565 = vst [vmem:[#allocation2 + $0x28] sm:$0xff] %v1549
      %1566 = vst [vmem:[#allocation2 + $0x30] sm:$0xff] %v1550
      %1567 = vst [vmem:[#allocation2 + $0x38] sm:$0xff] %v1551
      %1568 = vst [vmem:[#allocation2 + $0x40] sm:$0xff] %v1552
      %1569 = vst [vmem:[#allocation2 + $0x48] sm:$0xff] %v1553
      %1570 = vst [vmem:[#allocation2 + $0x50] sm:$0xff] %v1554
      %1571 = vst [vmem:[#allocation2 + $0x58] sm:$0xff] %v1555
      %1572 = vst [vmem:[#allocation2 + $0x60] sm:$0xff] %v1556
      %1573 = vst [vmem:[#allocation2 + $0x68] sm:$0xff] %v1557
      %1574 = vst [vmem:[#allocation2 + $0x70] sm:$0xff] %v1558
      %1575 = vst [vmem:[#allocation2 + $0x78] sm:$0xff] %v1559
    $region29: #{tpu_custom_call.1} parent=1 // pred_fallthru
      _
    %s1576 = sadd.s32 0, 1
    %s1577 = smul.u32 %s1576, 128
    %p1578 = scmp.gt.s32.totalorder %s1577, 12
    %s1579 = sadd.s32 0, 1
    %s1580 = smul.u32 %s1579, 128
    %p1581 = scmp.gt.s32.totalorder %s1580, 12
    %p1582 = por %p1578, %p1581
    // Predicated region
    $region30: #{tpu_custom_call.1} parent=1 // pred_check
      %p1583 = pneg %p1582
    $region31: #{tpu_custom_call.1} parent=1 // pred_check_branch
      %1585 = sbr.rel (%p1583) target = $region33
    $region32: #{tpu_custom_call.1} parent=1 // pred_region
      %s1586 = smul.u32 0, 128
      %v1587 = vlaneseq
      %v1588 = vshrl.u32 %v1587, 7
      %v1589 = vadd.s32 %v1588, 8
      %v1590 = vadd.s32 %v1588, 16
      %v1591 = vadd.s32 %v1588, 24
      %v1592 = vadd.s32 %v1588, 32
      %v1593 = vadd.s32 %v1588, 40
      %v1594 = vadd.s32 %v1588, 48
      %v1595 = vadd.s32 %v1588, 56
      %v1596 = vadd.s32 %v1588, 64
      %v1597 = vadd.s32 %v1588, 72
      %v1598 = vadd.s32 %v1588, 80
      %v1599 = vadd.s32 %v1588, 88
      %v1600 = vadd.s32 %v1588, 96
      %v1601 = vadd.s32 %v1588, 104
      %v1602 = vadd.s32 %v1588, 112
      %v1603 = vadd.s32 %v1588, 120
      %v1604 = vstv %s1586
      %v1605 = vadd.s32 %v1604, %v1588
      %v1606 = vadd.s32 %v1604, %v1589
      %v1607 = vadd.s32 %v1604, %v1590
      %v1608 = vadd.s32 %v1604, %v1591
      %v1609 = vadd.s32 %v1604, %v1592
      %v1610 = vadd.s32 %v1604, %v1593
      %v1611 = vadd.s32 %v1604, %v1594
      %v1612 = vadd.s32 %v1604, %v1595
      %v1613 = vadd.s32 %v1604, %v1596
      %v1614 = vadd.s32 %v1604, %v1597
      %v1615 = vadd.s32 %v1604, %v1598
      %v1616 = vadd.s32 %v1604, %v1599
      %v1617 = vadd.s32 %v1604, %v1600
      %v1618 = vadd.s32 %v1604, %v1601
      %v1619 = vadd.s32 %v1604, %v1602
      %v1620 = vadd.s32 %v1604, %v1603
      %s1621 = smul.u32 0, 128
      %v1622 = vlaneseq
      %v1623 = vand.u32 %v1622, 127
      %v1624 = vstv %s1621
      %v1625 = vadd.s32 %v1624, %v1623
      %vm1626 = vcmp.lt.s32.totalorder %v1605, 12
      %vm1627 = vcmp.lt.s32.totalorder %v1606, 12
      %vm1628 = vcmp.lt.s32.totalorder %v1607, 12
      %vm1629 = vcmp.lt.s32.totalorder %v1608, 12
      %vm1630 = vcmp.lt.s32.totalorder %v1609, 12
      %vm1631 = vcmp.lt.s32.totalorder %v1610, 12
      %vm1632 = vcmp.lt.s32.totalorder %v1611, 12
      %vm1633 = vcmp.lt.s32.totalorder %v1612, 12
      %vm1634 = vcmp.lt.s32.totalorder %v1613, 12
      %vm1635 = vcmp.lt.s32.totalorder %v1614, 12
      %vm1636 = vcmp.lt.s32.totalorder %v1615, 12
      %vm1637 = vcmp.lt.s32.totalorder %v1616, 12
      %vm1638 = vcmp.lt.s32.totalorder %v1617, 12
      %vm1639 = vcmp.lt.s32.totalorder %v1618, 12
      %vm1640 = vcmp.lt.s32.totalorder %v1619, 12
      %vm1641 = vcmp.lt.s32.totalorder %v1620, 12
      %vm1642 = vcmp.lt.s32.totalorder %v1625, 12
      %vm1643 = vmand %vm1626, %vm1642
      %vm1644 = vmand %vm1627, %vm1642
      %vm1645 = vmand %vm1628, %vm1642
      %vm1646 = vmand %vm1629, %vm1642
      %vm1647 = vmand %vm1630, %vm1642
      %vm1648 = vmand %vm1631, %vm1642
      %vm1649 = vmand %vm1632, %vm1642
      %vm1650 = vmand %vm1633, %vm1642
      %vm1651 = vmand %vm1634, %vm1642
      %vm1652 = vmand %vm1635, %vm1642
      %vm1653 = vmand %vm1636, %vm1642
      %vm1654 = vmand %vm1637, %vm1642
      %vm1655 = vmand %vm1638, %vm1642
      %vm1656 = vmand %vm1639, %vm1642
      %vm1657 = vmand %vm1640, %vm1642
      %vm1658 = vmand %vm1641, %vm1642
      %vm1659 = vcmp.eq.s32.totalorder %v1605, %v1625
      %vm1660 = vcmp.eq.s32.totalorder %v1606, %v1625
      %vm1661 = vcmp.eq.s32.totalorder %v1607, %v1625
      %vm1662 = vcmp.eq.s32.totalorder %v1608, %v1625
      %vm1663 = vcmp.eq.s32.totalorder %v1609, %v1625
      %vm1664 = vcmp.eq.s32.totalorder %v1610, %v1625
      %vm1665 = vcmp.eq.s32.totalorder %v1611, %v1625
      %vm1666 = vcmp.eq.s32.totalorder %v1612, %v1625
      %vm1667 = vcmp.eq.s32.totalorder %v1613, %v1625
      %vm1668 = vcmp.eq.s32.totalorder %v1614, %v1625
      %vm1669 = vcmp.eq.s32.totalorder %v1615, %v1625
      %vm1670 = vcmp.eq.s32.totalorder %v1616, %v1625
      %vm1671 = vcmp.eq.s32.totalorder %v1617, %v1625
      %vm1672 = vcmp.eq.s32.totalorder %v1618, %v1625
      %vm1673 = vcmp.eq.s32.totalorder %v1619, %v1625
      %vm1674 = vcmp.eq.s32.totalorder %v1620, %v1625
      %v1675 = vsel %vm1659, 1.0, 0.0
      %v1676 = vsel %vm1660, 1.0, 0.0
      %v1677 = vsel %vm1661, 1.0, 0.0
      %v1678 = vsel %vm1662, 1.0, 0.0
      %v1679 = vsel %vm1663, 1.0, 0.0
      %v1680 = vsel %vm1664, 1.0, 0.0
      %v1681 = vsel %vm1665, 1.0, 0.0
      %v1682 = vsel %vm1666, 1.0, 0.0
      %v1683 = vsel %vm1667, 1.0, 0.0
      %v1684 = vsel %vm1668, 1.0, 0.0
      %v1685 = vsel %vm1669, 1.0, 0.0
      %v1686 = vsel %vm1670, 1.0, 0.0
      %v1687 = vsel %vm1671, 1.0, 0.0
      %v1688 = vsel %vm1672, 1.0, 0.0
      %v1689 = vsel %vm1673, 1.0, 0.0
      %v1690 = vsel %vm1674, 1.0, 0.0
      %v1691 = vld [vmem:[#allocation2] sm:$0xff]
      %v1692 = vld [vmem:[#allocation2 + $0x8] sm:$0xff]
      %v1693 = vld [vmem:[#allocation2 + $0x10] sm:$0xff]
      %v1694 = vld [vmem:[#allocation2 + $0x18] sm:$0xff]
      %v1695 = vld [vmem:[#allocation2 + $0x20] sm:$0xff]
      %v1696 = vld [vmem:[#allocation2 + $0x28] sm:$0xff]
      %v1697 = vld [vmem:[#allocation2 + $0x30] sm:$0xff]
      %v1698 = vld [vmem:[#allocation2 + $0x38] sm:$0xff]
      %v1699 = vld [vmem:[#allocation2 + $0x40] sm:$0xff]
      %v1700 = vld [vmem:[#allocation2 + $0x48] sm:$0xff]
      %v1701 = vld [vmem:[#allocation2 + $0x50] sm:$0xff]
      %v1702 = vld [vmem:[#allocation2 + $0x58] sm:$0xff]
      %v1703 = vld [vmem:[#allocation2 + $0x60] sm:$0xff]
      %v1704 = vld [vmem:[#allocation2 + $0x68] sm:$0xff]
      %v1705 = vld [vmem:[#allocation2 + $0x70] sm:$0xff]
      %v1706 = vld [vmem:[#allocation2 + $0x78] sm:$0xff]
      %v1707 = vsel %vm1643, %v1691, %v1675
      %v1708 = vsel %vm1644, %v1692, %v1676
      %v1709 = vsel %vm1645, %v1693, %v1677
      %v1710 = vsel %vm1646, %v1694, %v1678
      %v1711 = vsel %vm1647, %v1695, %v1679
      %v1712 = vsel %vm1648, %v1696, %v1680
      %v1713 = vsel %vm1649, %v1697, %v1681
      %v1714 = vsel %vm1650, %v1698, %v1682
      %v1715 = vsel %vm1651, %v1699, %v1683
      %v1716 = vsel %vm1652, %v1700, %v1684
      %v1717 = vsel %vm1653, %v1701, %v1685
      %v1718 = vsel %vm1654, %v1702, %v1686
      %v1719 = vsel %vm1655, %v1703, %v1687
      %v1720 = vsel %vm1656, %v1704, %v1688
      %v1721 = vsel %vm1657, %v1705, %v1689
      %v1722 = vsel %vm1658, %v1706, %v1690
      %1723 = vst [vmem:[#allocation2] sm:$0xff] %v1707
      %1724 = vst [vmem:[#allocation2 + $0x8] sm:$0xff] %v1708
      %1725 = vst [vmem:[#allocation2 + $0x10] sm:$0xff] %v1709
      %1726 = vst [vmem:[#allocation2 + $0x18] sm:$0xff] %v1710
      %1727 = vst [vmem:[#allocation2 + $0x20] sm:$0xff] %v1711
      %1728 = vst [vmem:[#allocation2 + $0x28] sm:$0xff] %v1712
      %1729 = vst [vmem:[#allocation2 + $0x30] sm:$0xff] %v1713
      %1730 = vst [vmem:[#allocation2 + $0x38] sm:$0xff] %v1714
      %1731 = vst [vmem:[#allocation2 + $0x40] sm:$0xff] %v1715
      %1732 = vst [vmem:[#allocation2 + $0x48] sm:$0xff] %v1716
      %1733 = vst [vmem:[#allocation2 + $0x50] sm:$0xff] %v1717
      %1734 = vst [vmem:[#allocation2 + $0x58] sm:$0xff] %v1718
      %1735 = vst [vmem:[#allocation2 + $0x60] sm:$0xff] %v1719
      %1736 = vst [vmem:[#allocation2 + $0x68] sm:$0xff] %v1720
      %1737 = vst [vmem:[#allocation2 + $0x70] sm:$0xff] %v1721
      %1738 = vst [vmem:[#allocation2 + $0x78] sm:$0xff] %v1722
    $region33: #{tpu_custom_call.1} parent=1 // pred_fallthru
      _
    // Predicated region
    $region34: #{tpu_custom_call.1} parent=1 // pred_check
      _
    $region35: #{tpu_custom_call.1} parent=1 // pred_check_branch
      %1740 = sbr.rel (0) target = $region37
    $region36: #{tpu_custom_call.1} parent=1 // pred_region
      %s1742 = ssub.s32 2048, 2048
      %1743 = vsyncadd [#allocation3], %s1742
      %s1744 = sshll.u32 [#allocation2], 4
      %s1745 = int_to_ptr.vmem [resolvable:$true] %s1744
      %1750 = dma.vmem_to_hbm [thread:$0]  %s1745, 2048, %s6, [#allocation3], 128, 128, 8
    $region37: #{tpu_custom_call.1} parent=1 // pred_fallthru
      _
    // Predicated region
    $region38: #{tpu_custom_call.1} parent=1 // pred_check
      _
    $region39: #{tpu_custom_call.1} parent=1 // pred_check_branch
      %1752 = sbr.rel (0) target = $region41
    $region40: #{tpu_custom_call.1} parent=1 // pred_region
      %1753 = dma.done [#allocation3], 2048
    $region41: #{tpu_custom_call.1} parent=1 // pred_fallthru
      _
    %1754 = vsyncpa [#allocation3], 1

</llo_original>
